<compile_context>
chip_gen: v5e
topology: v5e:2x2
jax: 0.10.0
libtpu: 0.0.40
codegen_flags: <defaults>
</compile_context>

<pallas_src>
import functools

import jax
import jax.numpy as jnp
import numpy as np
from jax import lax
from jax.experimental import pallas as pl
from jax.experimental.pallas import tpu as pltpu


def _round_up(x, m):
    return (x + m - 1) // m * m


# ---------------------------------------------------------------------------
# Kernel 1: hoisted input projection  X_proj = X @ [W_ir|W_iz|W_in] + fused bias
# (the r/z columns of the bias also absorb b_hr/b_hz; b_in stays in the n column)
# ---------------------------------------------------------------------------
def _proj_kernel(x_ref, w_ref, b_ref, o_ref):
    o_ref[...] = (jnp.dot(x_ref[...], w_ref[...],
                          preferred_element_type=jnp.float32)
                  + b_ref[...]).astype(o_ref.dtype)


def _input_projection(x2d, w_ih_fused, b_fused, *, rows_per_block):
    M, Ep = x2d.shape
    N3 = w_ih_fused.shape[1]
    return pl.pallas_call(
        _proj_kernel,
        out_shape=jax.ShapeDtypeStruct((M, N3), jnp.float32),
        grid_spec=pltpu.PrefetchScalarGridSpec(
            num_scalar_prefetch=0,
            grid=(M // rows_per_block,),
            in_specs=[
                pl.BlockSpec((rows_per_block, Ep), lambda i: (i, 0)),
                pl.BlockSpec((Ep, N3), lambda i: (0, 0)),
                pl.BlockSpec((1, N3), lambda i: (0, 0)),
            ],
            out_specs=pl.BlockSpec((rows_per_block, N3), lambda i: (i, 0)),
        ),
        compiler_params=pltpu.CompilerParams(
            dimension_semantics=("parallel",)),
    )(x2d, w_ih_fused, b_fused)


# ---------------------------------------------------------------------------
# Kernel 2: GRU recurrence, Tt timesteps per grid step, hidden state in VMEM scratch
# ---------------------------------------------------------------------------
def _gru_kernel(lens_ref, xp_ref, whh_ref, bhn_ref,
                out_ref, hn_ref, h_scratch, *, tt, hp):
    tb = pl.program_id(0)

    @pl.when(tb == 0)
    def _():
        # initialize_hidden_state: zeros
        h_scratch[...] = jnp.zeros_like(h_scratch)

    lens = lens_ref[...]          # (Bp, Hp) int32, per-row length broadcast over lanes
    whh = whh_ref[...]            # (Hp, 3Hp) fused [W_hr|W_hz|W_hn]
    bhn = bhn_ref[...]            # (Bp, Hp)
    t0 = tb * tt

    def step(i, h_prev):
        xp = xp_ref[i]            # (Bp, 3Hp): input projection (+ b_ih, + b_hr/b_hz)
        hh = jnp.dot(h_prev, whh, preferred_element_type=jnp.float32)   # one fused MXU op
        r = jax.nn.sigmoid(xp[:, :hp] + hh[:, :hp])
        z = jax.nn.sigmoid(xp[:, hp:2 * hp] + hh[:, hp:2 * hp])
        n = jnp.tanh(xp[:, 2 * hp:] + r * (hh[:, 2 * hp:] + bhn))
        h_new = n + z * (h_prev - n)            # == (1-z)*n + z*h_prev
        # pack_padded_sequence semantics: state only advances while t < len[b];
        # padded output positions are zero (pad_packed_sequence).
        valid = lens > (t0 + i)                 # (Bp, Hp) bool, lane-dense compare
        h_next = jnp.where(valid, h_new, h_prev)
        out_ref[i] = jnp.where(valid, h_new, 0.0).astype(out_ref.dtype)
        return h_next

    h = lax.fori_loop(0, tt, step, h_scratch[...], unroll=True)
    h_scratch[...] = h

    @pl.when(tb == pl.num_programs(0) - 1)
    def _():
        hn_ref[...] = h.astype(hn_ref.dtype)


# ---------------------------------------------------------------------------
# Parameters (torch-shaped) and the forward wrapper
# ---------------------------------------------------------------------------
def make_encoder_params(key, vocab_size, embedding_dim, enc_units):
    """Deterministic init matching nn.Embedding + nn.GRU(E, H) parameter shapes."""
    ks = jax.random.split(key, 5)
    H = enc_units
    bound = 1.0 / np.sqrt(enc_units)
    u = lambda k, shape: jax.random.uniform(k, shape, jnp.float32, -bound, bound)
    return {
        "embedding": jax.random.normal(ks[0], (vocab_size, embedding_dim), jnp.float32),
        "w_ih": u(ks[1], (3 * H, embedding_dim)),   # torch weight_ih_l0, gate order (r, z, n)
        "w_hh": u(ks[2], (3 * H, H)),               # torch weight_hh_l0
        "b_ih": u(ks[3], (3 * H,)),
        "b_hh": u(ks[4], (3 * H,)),
    }


def encoder_forward(tokens, lens, params, *, tt=8):
    """tokens: (T, B) int32 time-major; lens: (B,) int32 (sorted desc, as pack_padded expects).
    Returns (output (T, B, H) f32, hidden (1, B, H) f32)."""
    E = params["embedding"].shape[1]
    H = params["w_hh"].shape[1]
    T, B = tokens.shape

    Bp = _round_up(B, 8)          # f32 sublane
    Hp = _round_up(H, 128)        # lane
    Ep = _round_up(E, 128)
    Tp = _round_up(T, tt)

    # Embedding lookup (gather) — plain-JAX glue; padded to vreg-aligned shapes.
    emb = params["embedding"][tokens].astype(jnp.float32)              # (T, B, E)
    emb = jnp.pad(emb, ((0, Tp - T), (0, Bp - B), (0, Ep - E)))

    # ---- fused / padded weight layout --------------------------------------
    w_ih, w_hh = params["w_ih"], params["w_hh"]
    b_ih, b_hh = params["b_ih"], params["b_hh"]

    def split3(a):
        return a[0:H], a[H:2 * H], a[2 * H:3 * H]

    def pad_w(w, rows, cols):
        return jnp.pad(w, ((0, rows - w.shape[0]), (0, cols - w.shape[1])))

    def pad_b(b):
        return jnp.pad(b, (0, Hp - H))

    wir, wiz, win = split3(w_ih)       # (H, E) each
    whr, whz, whn = split3(w_hh)       # (H, H) each
    bir, biz, bin_ = split3(b_ih)
    bhr, bhz, bhn = split3(b_hh)

    w_ih_f = jnp.concatenate([pad_w(wir.T, Ep, Hp), pad_w(wiz.T, Ep, Hp),
                              pad_w(win.T, Ep, Hp)], axis=1)           # (Ep, 3Hp)
    w_hh_f = jnp.concatenate([pad_w(whr.T, Hp, Hp), pad_w(whz.T, Hp, Hp),
                              pad_w(whn.T, Hp, Hp)], axis=1)           # (Hp, 3Hp)
    # b_ir+b_hr and b_iz+b_hz fuse into the hoisted projection; b_hn must stay split
    # because r multiplies (h @ W_hn + b_hn).
    b_proj = jnp.concatenate([pad_b(bir + bhr), pad_b(biz + bhz), pad_b(bin_)])[None]  # (1, 3Hp)
    b_hn_b = jnp.broadcast_to(pad_b(bhn)[None, :], (Bp, Hp))                            # (Bp, Hp)

    # ---- kernel 1: hoisted input projection (T*B rows fill the MXU) --------
    x2d = emb.reshape(Tp * Bp, Ep)
    xproj = _input_projection(x2d, w_ih_f, b_proj, rows_per_block=tt * Bp)
    xproj = xproj.reshape(Tp, Bp, 3 * Hp)

    # ---- kernel 2: serial recurrence over time blocks -----------------------
    lens_p = jnp.zeros((Bp,), jnp.int32).at[:B].set(lens.astype(jnp.int32))
    lens_b = jnp.broadcast_to(lens_p[:, None], (Bp, Hp))    # lane-dense mask source

    kernel = functools.partial(_gru_kernel, tt=tt, hp=Hp)
    out_p, hn_p = pl.pallas_call(
        kernel,
        out_shape=(jax.ShapeDtypeStruct((Tp, Bp, Hp), jnp.float32),
                   jax.ShapeDtypeStruct((Bp, Hp), jnp.float32)),
        grid_spec=pltpu.PrefetchScalarGridSpec(
            num_scalar_prefetch=0,
            grid=(Tp // tt,),
            in_specs=[
                pl.BlockSpec((Bp, Hp), lambda i: (0, 0)),              # lens (resident)
                pl.BlockSpec((tt, Bp, 3 * Hp), lambda i: (i, 0, 0)),   # x_proj time block
                pl.BlockSpec((Hp, 3 * Hp), lambda i: (0, 0)),          # fused W_hh (resident)
                pl.BlockSpec((Bp, Hp), lambda i: (0, 0)),              # b_hn (resident)
            ],
            out_specs=[
                pl.BlockSpec((tt, Bp, Hp), lambda i: (i, 0, 0)),       # output[t] block
                pl.BlockSpec((Bp, Hp), lambda i: (0, 0)),              # final hidden (resident)
            ],
            scratch_shapes=[pltpu.VMEM((Bp, Hp), jnp.float32)],
        ),
        compiler_params=pltpu.CompilerParams(
            dimension_semantics=("arbitrary",)),   # recurrence is serial over time
    )(lens_b, xproj, w_hh_f, b_hn_b)

    # TODO(synk): for large H on v7x (64 MiB VMEM) cast weights to bf16 and/or K-tile W_hh.
    output = out_p[:T, :B, :H]
    hidden = hn_p[:B, :H][None]
    return output, hidden


# ---------------------------------------------------------------------------
# Pure-JAX reference with identical semantics (sanity check)
# ---------------------------------------------------------------------------
def _reference_forward(tokens, lens, params):
    emb = params["embedding"][tokens].astype(jnp.float32)
    T, B, _ = emb.shape
    H = params["w_hh"].shape[1]
    w_ih, w_hh = params["w_ih"], params["w_hh"]
    b_ih, b_hh = params["b_ih"], params["b_hh"]
    wir, wiz, win = w_ih[:H].T, w_ih[H:2 * H].T, w_ih[2 * H:].T
    whr, whz, whn = w_hh[:H].T, w_hh[H:2 * H].T, w_hh[2 * H:].T
    bir, biz, bin_ = b_ih[:H], b_ih[H:2 * H], b_ih[2 * H:]
    bhr, bhz, bhn = b_hh[:H], b_hh[H:2 * H], b_hh[2 * H:]

    def step(h, inp):
        x_t, t = inp
        r = jax.nn.sigmoid(x_t @ wir + bir + h @ whr + bhr)
        z = jax.nn.sigmoid(x_t @ wiz + biz + h @ whz + bhz)
        n = jnp.tanh(x_t @ win + bin_ + r * (h @ whn + bhn))
        h_new = (1.0 - z) * n + z * h
        valid = lens.reshape(B, 1) > t
        h_next = jnp.where(valid, h_new, h)
        return h_next, jnp.where(valid, h_new, 0.0)

    h0 = jnp.zeros((B, H), jnp.float32)
    h_last, outs = lax.scan(step, h0, (emb, jnp.arange(T)))
    return outs, h_last[None]


if __name__ == "__main__":
    # Small shapes consistent with the module: seq=8, batch=4, embedding_dim=256, hidden=32.
    T, B, E, H, V = 8, 4, 256, 32, 50

    key = jax.random.PRNGKey(0)
    k_tok, k_param = jax.random.split(key)

    params = make_encoder_params(k_param, vocab_size=V, embedding_dim=E, enc_units=H)
    tokens = jax.random.randint(k_tok, (T, B), 0, V, dtype=jnp.int32)
    lens = jnp.array([8, 6, 5, 3], dtype=jnp.int32)   # sorted descending (pack_padded default)

    output, hidden = jax.jit(encoder_forward)(tokens, lens, params)
    output = jax.block_until_ready(output)
    hidden = jax.block_until_ready(hidden)

    assert output.shape == (T, B, H) and hidden.shape == (1, B, H)

    ref_out, ref_hid = _reference_forward(tokens, lens, params)
    np.testing.assert_allclose(np.asarray(output), np.asarray(ref_out), atol=1e-5, rtol=1e-5)
    np.testing.assert_allclose(np.asarray(hidden), np.asarray(ref_hid), atol=1e-5, rtol=1e-5)

    print("KERNEL_OK")
</pallas_src>

<mosaic_0001>
module attributes {stable_mosaic.version = 11 : i64} {
  func.func @_gru_kernel(%arg0: i32, %arg1: memref<8x128xi32, #tpu.memory_space<vmem>>, %arg2: memref<8x8x384xf32, #tpu.memory_space<vmem>>, %arg3: memref<128x384xf32, #tpu.memory_space<vmem>>, %arg4: memref<8x128xf32, #tpu.memory_space<vmem>>, %arg5: memref<8x8x128xf32, #tpu.memory_space<vmem>>, %arg6: memref<8x128xf32, #tpu.memory_space<vmem>>, %arg7: memref<8x128xf32, #tpu.memory_space<vmem>>) attributes {dimension_semantics = [#tpu.dimension_semantics<arbitrary>], iteration_bounds = array<i64: 1>, scalar_prefetch = 0 : i64, scratch_operands = 1 : i64, tpu.core_type = #tpu.core_type<tc>, window_params = [{pipeline_mode = #tpu.pipeline_mode<synchronous>, transform_indices = @transform_0, window_bounds = array<i64: 8, 128>}, {transform_indices = @transform_1, window_bounds = array<i64: 8, 8, 384>}, {pipeline_mode = #tpu.pipeline_mode<synchronous>, transform_indices = @transform_2, window_bounds = array<i64: 128, 384>}, {pipeline_mode = #tpu.pipeline_mode<synchronous>, transform_indices = @transform_3, window_bounds = array<i64: 8, 128>}, {transform_indices = @transform_4, window_bounds = array<i64: 8, 8, 128>}, {pipeline_mode = #tpu.pipeline_mode<synchronous>, transform_indices = @transform_5, window_bounds = array<i64: 8, 128>}]} {
    %c0_i32 = arith.constant 0 : i32
    %0 = arith.cmpi eq, %arg0, %c0_i32 : i32
    %1 = arith.extui %0 : i1 to i32
    %c0_i32_0 = arith.constant 0 : i32
    %2 = arith.cmpi ne, %1, %c0_i32_0 : i32
    scf.if %2 {
      %cst_77 = arith.constant 0.000000e+00 : f32
      %324 = vector.broadcast %cst_77 : f32 to vector<8x128xf32>
      %c0_78 = arith.constant 0 : index
      %c0_79 = arith.constant 0 : index
      %325 = vector.load %arg7[%c0_78, %c0_79] : memref<8x128xf32, #tpu.memory_space<vmem>>, vector<8x128xf32>
      tpu.vector_store %arg7[%c0_78, %c0_79], %324 {strides = array<i32>} : memref<8x128xf32, #tpu.memory_space<vmem>>, vector<8x128xf32>,
    } else {
    }
    %c0 = arith.constant 0 : index
    %c0_1 = arith.constant 0 : index
    %3 = vector.load %arg1[%c0, %c0_1] : memref<8x128xi32, #tpu.memory_space<vmem>>, vector<8x128xi32>
    %c0_2 = arith.constant 0 : index
    %c0_3 = arith.constant 0 : index
    %4 = vector.load %arg3[%c0_2, %c0_3] : memref<128x384xf32, #tpu.memory_space<vmem>>, vector<128x384xf32>
    %c0_4 = arith.constant 0 : index
    %c0_5 = arith.constant 0 : index
    %5 = vector.load %arg4[%c0_4, %c0_5] : memref<8x128xf32, #tpu.memory_space<vmem>>, vector<8x128xf32>
    %c8_i32 = arith.constant 8 : i32
    %6 = arith.muli %arg0, %c8_i32 : i32
    %c0_6 = arith.constant 0 : index
    %c0_7 = arith.constant 0 : index
    %7 = vector.load %arg7[%c0_6, %c0_7] : memref<8x128xf32, #tpu.memory_space<vmem>>, vector<8x128xf32>
    %c0_i32_8 = arith.constant 0 : i32
    %8 = arith.index_cast %c0_i32_8 : i32 to index
    %c0_9 = arith.constant 0 : index
    %c0_10 = arith.constant 0 : index
    %9 = vector.load %arg2[%8, %c0_9, %c0_10] : memref<8x8x384xf32, #tpu.memory_space<vmem>>, vector<1x8x384xf32>
    %10 = vector.shape_cast %9 : vector<1x8x384xf32> to vector<8x384xf32>
    %cst = arith.constant dense<0.000000e+00> : vector<8x384xf32>
    %11 = tpu.matmul %7, %4, %cst {dimension_numbers = #tpu.dot_dimension_numbers<[1], [0], [0], [1], [0, 0, 1, 1], [], []>} : vector<8x128xf32>, vector<128x384xf32>, vector<8x384xf32> -> vector<8x384xf32>
    %12 = vector.extract_strided_slice %10 {offsets = [0, 0], sizes = [8, 128], strides = [1, 1]} : vector<8x384xf32> to vector<8x128xf32>
    %13 = vector.extract_strided_slice %11 {offsets = [0, 0], sizes = [8, 128], strides = [1, 1]} : vector<8x384xf32> to vector<8x128xf32>
    %14 = arith.addf %12, %13 : vector<8x128xf32>
    %15 = arith.negf %14 : vector<8x128xf32>
    %16 = math.exp %15 : vector<8x128xf32>
    %cst_11 = arith.constant 1.000000e+00 : f32
    %17 = vector.broadcast %cst_11 : f32 to vector<8x128xf32>
    %18 = arith.addf %17, %16 : vector<8x128xf32>
    %19 = arith.divf %17, %18 : vector<8x128xf32>
    %20 = vector.extract_strided_slice %10 {offsets = [0, 128], sizes = [8, 128], strides = [1, 1]} : vector<8x384xf32> to vector<8x128xf32>
    %21 = vector.extract_strided_slice %11 {offsets = [0, 128], sizes = [8, 128], strides = [1, 1]} : vector<8x384xf32> to vector<8x128xf32>
    %22 = arith.addf %20, %21 : vector<8x128xf32>
    %23 = arith.negf %22 : vector<8x128xf32>
    %24 = math.exp %23 : vector<8x128xf32>
    %cst_12 = arith.constant 1.000000e+00 : f32
    %25 = vector.broadcast %cst_12 : f32 to vector<8x128xf32>
    %26 = arith.addf %25, %24 : vector<8x128xf32>
    %27 = arith.divf %25, %26 : vector<8x128xf32>
    %28 = vector.extract_strided_slice %10 {offsets = [0, 256], sizes = [8, 128], strides = [1, 1]} : vector<8x384xf32> to vector<8x128xf32>
    %29 = vector.extract_strided_slice %11 {offsets = [0, 256], sizes = [8, 128], strides = [1, 1]} : vector<8x384xf32> to vector<8x128xf32>
    %30 = arith.addf %29, %5 : vector<8x128xf32>
    %31 = arith.mulf %19, %30 : vector<8x128xf32>
    %32 = arith.addf %28, %31 : vector<8x128xf32>
    %33 = math.tanh %32 : vector<8x128xf32>
    %34 = arith.subf %7, %33 : vector<8x128xf32>
    %35 = arith.mulf %27, %34 : vector<8x128xf32>
    %36 = arith.addf %33, %35 : vector<8x128xf32>
    %37 = arith.addi %6, %c0_i32_8 : i32
    %38 = vector.broadcast %37 : i32 to vector<8x128xi32>
    %39 = arith.cmpi sgt, %3, %38 : vector<8x128xi32>
    %40 = arith.select %39, %36, %7 : vector<8x128xi1>, vector<8x128xf32>
    %cst_13 = arith.constant 0.000000e+00 : f32
    %41 = vector.broadcast %cst_13 : f32 to vector<8x128xf32>
    %42 = arith.select %39, %36, %41 : vector<8x128xi1>, vector<8x128xf32>
    %43 = arith.index_cast %c0_i32_8 : i32 to index
    %c0_14 = arith.constant 0 : index
    %c0_15 = arith.constant 0 : index
    %44 = vector.load %arg5[%43, %c0_14, %c0_15] : memref<8x8x128xf32, #tpu.memory_space<vmem>>, vector<1x8x128xf32>
    %45 = vector.shape_cast %44 : vector<1x8x128xf32> to vector<8x128xf32>
    %46 = vector.shape_cast %42 : vector<8x128xf32> to vector<1x8x128xf32>
    tpu.vector_store %arg5[%43, %c0_14, %c0_15], %46 {strides = array<i32>} : memref<8x8x128xf32, #tpu.memory_space<vmem>>, vector<1x8x128xf32>,
    %c1_i32 = arith.constant 1 : i32
    %47 = arith.index_cast %c1_i32 : i32 to index
    %c0_16 = arith.constant 0 : index
    %c0_17 = arith.constant 0 : index
    %48 = vector.load %arg2[%47, %c0_16, %c0_17] : memref<8x8x384xf32, #tpu.memory_space<vmem>>, vector<1x8x384xf32>
    %49 = vector.shape_cast %48 : vector<1x8x384xf32> to vector<8x384xf32>
    %cst_18 = arith.constant dense<0.000000e+00> : vector<8x384xf32>
    %50 = tpu.matmul %40, %4, %cst_18 {dimension_numbers = #tpu.dot_dimension_numbers<[1], [0], [0], [1], [0, 0, 1, 1], [], []>} : vector<8x128xf32>, vector<128x384xf32>, vector<8x384xf32> -> vector<8x384xf32>
    %51 = vector.extract_strided_slice %49 {offsets = [0, 0], sizes = [8, 128], strides = [1, 1]} : vector<8x384xf32> to vector<8x128xf32>
    %52 = vector.extract_strided_slice %50 {offsets = [0, 0], sizes = [8, 128], strides = [1, 1]} : vector<8x384xf32> to vector<8x128xf32>
    %53 = arith.addf %51, %52 : vector<8x128xf32>
    %54 = arith.negf %53 : vector<8x128xf32>
    %55 = math.exp %54 : vector<8x128xf32>
    %cst_19 = arith.constant 1.000000e+00 : f32
    %56 = vector.broadcast %cst_19 : f32 to vector<8x128xf32>
    %57 = arith.addf %56, %55 : vector<8x128xf32>
    %58 = arith.divf %56, %57 : vector<8x128xf32>
    %59 = vector.extract_strided_slice %49 {offsets = [0, 128], sizes = [8, 128], strides = [1, 1]} : vector<8x384xf32> to vector<8x128xf32>
    %60 = vector.extract_strided_slice %50 {offsets = [0, 128], sizes = [8, 128], strides = [1, 1]} : vector<8x384xf32> to vector<8x128xf32>
    %61 = arith.addf %59, %60 : vector<8x128xf32>
    %62 = arith.negf %61 : vector<8x128xf32>
    %63 = math.exp %62 : vector<8x128xf32>
    %cst_20 = arith.constant 1.000000e+00 : f32
    %64 = vector.broadcast %cst_20 : f32 to vector<8x128xf32>
    %65 = arith.addf %64, %63 : vector<8x128xf32>
    %66 = arith.divf %64, %65 : vector<8x128xf32>
    %67 = vector.extract_strided_slice %49 {offsets = [0, 256], sizes = [8, 128], strides = [1, 1]} : vector<8x384xf32> to vector<8x128xf32>
    %68 = vector.extract_strided_slice %50 {offsets = [0, 256], sizes = [8, 128], strides = [1, 1]} : vector<8x384xf32> to vector<8x128xf32>
    %69 = arith.addf %68, %5 : vector<8x128xf32>
    %70 = arith.mulf %58, %69 : vector<8x128xf32>
    %71 = arith.addf %67, %70 : vector<8x128xf32>
    %72 = math.tanh %71 : vector<8x128xf32>
    %73 = arith.subf %40, %72 : vector<8x128xf32>
    %74 = arith.mulf %66, %73 : vector<8x128xf32>
    %75 = arith.addf %72, %74 : vector<8x128xf32>
    %76 = arith.addi %6, %c1_i32 : i32
    %77 = vector.broadcast %76 : i32 to vector<8x128xi32>
    %78 = arith.cmpi sgt, %3, %77 : vector<8x128xi32>
    %79 = arith.select %78, %75, %40 : vector<8x128xi1>, vector<8x128xf32>
    %cst_21 = arith.constant 0.000000e+00 : f32
    %80 = vector.broadcast %cst_21 : f32 to vector<8x128xf32>
    %81 = arith.select %78, %75, %80 : vector<8x128xi1>, vector<8x128xf32>
    %82 = arith.index_cast %c1_i32 : i32 to index
    %c0_22 = arith.constant 0 : index
    %c0_23 = arith.constant 0 : index
    %83 = vector.load %arg5[%82, %c0_22, %c0_23] : memref<8x8x128xf32, #tpu.memory_space<vmem>>, vector<1x8x128xf32>
    %84 = vector.shape_cast %83 : vector<1x8x128xf32> to vector<8x128xf32>
    %85 = vector.shape_cast %81 : vector<8x128xf32> to vector<1x8x128xf32>
    tpu.vector_store %arg5[%82, %c0_22, %c0_23], %85 {strides = array<i32>} : memref<8x8x128xf32, #tpu.memory_space<vmem>>, vector<1x8x128xf32>,
    %c2_i32 = arith.constant 2 : i32
    %86 = arith.index_cast %c2_i32 : i32 to index
    %c0_24 = arith.constant 0 : index
    %c0_25 = arith.constant 0 : index
    %87 = vector.load %arg2[%86, %c0_24, %c0_25] : memref<8x8x384xf32, #tpu.memory_space<vmem>>, vector<1x8x384xf32>
    %88 = vector.shape_cast %87 : vector<1x8x384xf32> to vector<8x384xf32>
    %cst_26 = arith.constant dense<0.000000e+00> : vector<8x384xf32>
    %89 = tpu.matmul %79, %4, %cst_26 {dimension_numbers = #tpu.dot_dimension_numbers<[1], [0], [0], [1], [0, 0, 1, 1], [], []>} : vector<8x128xf32>, vector<128x384xf32>, vector<8x384xf32> -> vector<8x384xf32>
    %90 = vector.extract_strided_slice %88 {offsets = [0, 0], sizes = [8, 128], strides = [1, 1]} : vector<8x384xf32> to vector<8x128xf32>
    %91 = vector.extract_strided_slice %89 {offsets = [0, 0], sizes = [8, 128], strides = [1, 1]} : vector<8x384xf32> to vector<8x128xf32>
    %92 = arith.addf %90, %91 : vector<8x128xf32>
    %93 = arith.negf %92 : vector<8x128xf32>
    %94 = math.exp %93 : vector<8x128xf32>
    %cst_27 = arith.constant 1.000000e+00 : f32
    %95 = vector.broadcast %cst_27 : f32 to vector<8x128xf32>
    %96 = arith.addf %95, %94 : vector<8x128xf32>
    %97 = arith.divf %95, %96 : vector<8x128xf32>
    %98 = vector.extract_strided_slice %88 {offsets = [0, 128], sizes = [8, 128], strides = [1, 1]} : vector<8x384xf32> to vector<8x128xf32>
    %99 = vector.extract_strided_slice %89 {offsets = [0, 128], sizes = [8, 128], strides = [1, 1]} : vector<8x384xf32> to vector<8x128xf32>
    %100 = arith.addf %98, %99 : vector<8x128xf32>
    %101 = arith.negf %100 : vector<8x128xf32>
    %102 = math.exp %101 : vector<8x128xf32>
    %cst_28 = arith.constant 1.000000e+00 : f32
    %103 = vector.broadcast %cst_28 : f32 to vector<8x128xf32>
    %104 = arith.addf %103, %102 : vector<8x128xf32>
    %105 = arith.divf %103, %104 : vector<8x128xf32>
    %106 = vector.extract_strided_slice %88 {offsets = [0, 256], sizes = [8, 128], strides = [1, 1]} : vector<8x384xf32> to vector<8x128xf32>
    %107 = vector.extract_strided_slice %89 {offsets = [0, 256], sizes = [8, 128], strides = [1, 1]} : vector<8x384xf32> to vector<8x128xf32>
    %108 = arith.addf %107, %5 : vector<8x128xf32>
    %109 = arith.mulf %97, %108 : vector<8x128xf32>
    %110 = arith.addf %106, %109 : vector<8x128xf32>
    %111 = math.tanh %110 : vector<8x128xf32>
    %112 = arith.subf %79, %111 : vector<8x128xf32>
    %113 = arith.mulf %105, %112 : vector<8x128xf32>
    %114 = arith.addf %111, %113 : vector<8x128xf32>
    %115 = arith.addi %6, %c2_i32 : i32
    %116 = vector.broadcast %115 : i32 to vector<8x128xi32>
    %117 = arith.cmpi sgt, %3, %116 : vector<8x128xi32>
    %118 = arith.select %117, %114, %79 : vector<8x128xi1>, vector<8x128xf32>
    %cst_29 = arith.constant 0.000000e+00 : f32
    %119 = vector.broadcast %cst_29 : f32 to vector<8x128xf32>
    %120 = arith.select %117, %114, %119 : vector<8x128xi1>, vector<8x128xf32>
    %121 = arith.index_cast %c2_i32 : i32 to index
    %c0_30 = arith.constant 0 : index
    %c0_31 = arith.constant 0 : index
    %122 = vector.load %arg5[%121, %c0_30, %c0_31] : memref<8x8x128xf32, #tpu.memory_space<vmem>>, vector<1x8x128xf32>
    %123 = vector.shape_cast %122 : vector<1x8x128xf32> to vector<8x128xf32>
    %124 = vector.shape_cast %120 : vector<8x128xf32> to vector<1x8x128xf32>
    tpu.vector_store %arg5[%121, %c0_30, %c0_31], %124 {strides = array<i32>} : memref<8x8x128xf32, #tpu.memory_space<vmem>>, vector<1x8x128xf32>,
    %c3_i32 = arith.constant 3 : i32
    %125 = arith.index_cast %c3_i32 : i32 to index
    %c0_32 = arith.constant 0 : index
    %c0_33 = arith.constant 0 : index
    %126 = vector.load %arg2[%125, %c0_32, %c0_33] : memref<8x8x384xf32, #tpu.memory_space<vmem>>, vector<1x8x384xf32>
    %127 = vector.shape_cast %126 : vector<1x8x384xf32> to vector<8x384xf32>
    %cst_34 = arith.constant dense<0.000000e+00> : vector<8x384xf32>
    %128 = tpu.matmul %118, %4, %cst_34 {dimension_numbers = #tpu.dot_dimension_numbers<[1], [0], [0], [1], [0, 0, 1, 1], [], []>} : vector<8x128xf32>, vector<128x384xf32>, vector<8x384xf32> -> vector<8x384xf32>
    %129 = vector.extract_strided_slice %127 {offsets = [0, 0], sizes = [8, 128], strides = [1, 1]} : vector<8x384xf32> to vector<8x128xf32>
    %130 = vector.extract_strided_slice %128 {offsets = [0, 0], sizes = [8, 128], strides = [1, 1]} : vector<8x384xf32> to vector<8x128xf32>
    %131 = arith.addf %129, %130 : vector<8x128xf32>
    %132 = arith.negf %131 : vector<8x128xf32>
    %133 = math.exp %132 : vector<8x128xf32>
    %cst_35 = arith.constant 1.000000e+00 : f32
    %134 = vector.broadcast %cst_35 : f32 to vector<8x128xf32>
    %135 = arith.addf %134, %133 : vector<8x128xf32>
    %136 = arith.divf %134, %135 : vector<8x128xf32>
    %137 = vector.extract_strided_slice %127 {offsets = [0, 128], sizes = [8, 128], strides = [1, 1]} : vector<8x384xf32> to vector<8x128xf32>
    %138 = vector.extract_strided_slice %128 {offsets = [0, 128], sizes = [8, 128], strides = [1, 1]} : vector<8x384xf32> to vector<8x128xf32>
    %139 = arith.addf %137, %138 : vector<8x128xf32>
    %140 = arith.negf %139 : vector<8x128xf32>
    %141 = math.exp %140 : vector<8x128xf32>
    %cst_36 = arith.constant 1.000000e+00 : f32
    %142 = vector.broadcast %cst_36 : f32 to vector<8x128xf32>
    %143 = arith.addf %142, %141 : vector<8x128xf32>
    %144 = arith.divf %142, %143 : vector<8x128xf32>
    %145 = vector.extract_strided_slice %127 {offsets = [0, 256], sizes = [8, 128], strides = [1, 1]} : vector<8x384xf32> to vector<8x128xf32>
    %146 = vector.extract_strided_slice %128 {offsets = [0, 256], sizes = [8, 128], strides = [1, 1]} : vector<8x384xf32> to vector<8x128xf32>
    %147 = arith.addf %146, %5 : vector<8x128xf32>
    %148 = arith.mulf %136, %147 : vector<8x128xf32>
    %149 = arith.addf %145, %148 : vector<8x128xf32>
    %150 = math.tanh %149 : vector<8x128xf32>
    %151 = arith.subf %118, %150 : vector<8x128xf32>
    %152 = arith.mulf %144, %151 : vector<8x128xf32>
    %153 = arith.addf %150, %152 : vector<8x128xf32>
    %154 = arith.addi %6, %c3_i32 : i32
    %155 = vector.broadcast %154 : i32 to vector<8x128xi32>
    %156 = arith.cmpi sgt, %3, %155 : vector<8x128xi32>
    %157 = arith.select %156, %153, %118 : vector<8x128xi1>, vector<8x128xf32>
    %cst_37 = arith.constant 0.000000e+00 : f32
    %158 = vector.broadcast %cst_37 : f32 to vector<8x128xf32>
    %159 = arith.select %156, %153, %158 : vector<8x128xi1>, vector<8x128xf32>
    %160 = arith.index_cast %c3_i32 : i32 to index
    %c0_38 = arith.constant 0 : index
    %c0_39 = arith.constant 0 : index
    %161 = vector.load %arg5[%160, %c0_38, %c0_39] : memref<8x8x128xf32, #tpu.memory_space<vmem>>, vector<1x8x128xf32>
    %162 = vector.shape_cast %161 : vector<1x8x128xf32> to vector<8x128xf32>
    %163 = vector.shape_cast %159 : vector<8x128xf32> to vector<1x8x128xf32>
    tpu.vector_store %arg5[%160, %c0_38, %c0_39], %163 {strides = array<i32>} : memref<8x8x128xf32, #tpu.memory_space<vmem>>, vector<1x8x128xf32>,
    %c4_i32 = arith.constant 4 : i32
    %164 = arith.index_cast %c4_i32 : i32 to index
    %c0_40 = arith.constant 0 : index
    %c0_41 = arith.constant 0 : index
    %165 = vector.load %arg2[%164, %c0_40, %c0_41] : memref<8x8x384xf32, #tpu.memory_space<vmem>>, vector<1x8x384xf32>
    %166 = vector.shape_cast %165 : vector<1x8x384xf32> to vector<8x384xf32>
    %cst_42 = arith.constant dense<0.000000e+00> : vector<8x384xf32>
    %167 = tpu.matmul %157, %4, %cst_42 {dimension_numbers = #tpu.dot_dimension_numbers<[1], [0], [0], [1], [0, 0, 1, 1], [], []>} : vector<8x128xf32>, vector<128x384xf32>, vector<8x384xf32> -> vector<8x384xf32>
    %168 = vector.extract_strided_slice %166 {offsets = [0, 0], sizes = [8, 128], strides = [1, 1]} : vector<8x384xf32> to vector<8x128xf32>
    %169 = vector.extract_strided_slice %167 {offsets = [0, 0], sizes = [8, 128], strides = [1, 1]} : vector<8x384xf32> to vector<8x128xf32>
    %170 = arith.addf %168, %169 : vector<8x128xf32>
    %171 = arith.negf %170 : vector<8x128xf32>
    %172 = math.exp %171 : vector<8x128xf32>
    %cst_43 = arith.constant 1.000000e+00 : f32
    %173 = vector.broadcast %cst_43 : f32 to vector<8x128xf32>
    %174 = arith.addf %173, %172 : vector<8x128xf32>
    %175 = arith.divf %173, %174 : vector<8x128xf32>
    %176 = vector.extract_strided_slice %166 {offsets = [0, 128], sizes = [8, 128], strides = [1, 1]} : vector<8x384xf32> to vector<8x128xf32>
    %177 = vector.extract_strided_slice %167 {offsets = [0, 128], sizes = [8, 128], strides = [1, 1]} : vector<8x384xf32> to vector<8x128xf32>
    %178 = arith.addf %176, %177 : vector<8x128xf32>
    %179 = arith.negf %178 : vector<8x128xf32>
    %180 = math.exp %179 : vector<8x128xf32>
    %cst_44 = arith.constant 1.000000e+00 : f32
    %181 = vector.broadcast %cst_44 : f32 to vector<8x128xf32>
    %182 = arith.addf %181, %180 : vector<8x128xf32>
    %183 = arith.divf %181, %182 : vector<8x128xf32>
    %184 = vector.extract_strided_slice %166 {offsets = [0, 256], sizes = [8, 128], strides = [1, 1]} : vector<8x384xf32> to vector<8x128xf32>
    %185 = vector.extract_strided_slice %167 {offsets = [0, 256], sizes = [8, 128], strides = [1, 1]} : vector<8x384xf32> to vector<8x128xf32>
    %186 = arith.addf %185, %5 : vector<8x128xf32>
    %187 = arith.mulf %175, %186 : vector<8x128xf32>
    %188 = arith.addf %184, %187 : vector<8x128xf32>
    %189 = math.tanh %188 : vector<8x128xf32>
    %190 = arith.subf %157, %189 : vector<8x128xf32>
    %191 = arith.mulf %183, %190 : vector<8x128xf32>
    %192 = arith.addf %189, %191 : vector<8x128xf32>
    %193 = arith.addi %6, %c4_i32 : i32
    %194 = vector.broadcast %193 : i32 to vector<8x128xi32>
    %195 = arith.cmpi sgt, %3, %194 : vector<8x128xi32>
    %196 = arith.select %195, %192, %157 : vector<8x128xi1>, vector<8x128xf32>
    %cst_45 = arith.constant 0.000000e+00 : f32
    %197 = vector.broadcast %cst_45 : f32 to vector<8x128xf32>
    %198 = arith.select %195, %192, %197 : vector<8x128xi1>, vector<8x128xf32>
    %199 = arith.index_cast %c4_i32 : i32 to index
    %c0_46 = arith.constant 0 : index
    %c0_47 = arith.constant 0 : index
    %200 = vector.load %arg5[%199, %c0_46, %c0_47] : memref<8x8x128xf32, #tpu.memory_space<vmem>>, vector<1x8x128xf32>
    %201 = vector.shape_cast %200 : vector<1x8x128xf32> to vector<8x128xf32>
    %202 = vector.shape_cast %198 : vector<8x128xf32> to vector<1x8x128xf32>
    tpu.vector_store %arg5[%199, %c0_46, %c0_47], %202 {strides = array<i32>} : memref<8x8x128xf32, #tpu.memory_space<vmem>>, vector<1x8x128xf32>,
    %c5_i32 = arith.constant 5 : i32
    %203 = arith.index_cast %c5_i32 : i32 to index
    %c0_48 = arith.constant 0 : index
    %c0_49 = arith.constant 0 : index
    %204 = vector.load %arg2[%203, %c0_48, %c0_49] : memref<8x8x384xf32, #tpu.memory_space<vmem>>, vector<1x8x384xf32>
    %205 = vector.shape_cast %204 : vector<1x8x384xf32> to vector<8x384xf32>
    %cst_50 = arith.constant dense<0.000000e+00> : vector<8x384xf32>
    %206 = tpu.matmul %196, %4, %cst_50 {dimension_numbers = #tpu.dot_dimension_numbers<[1], [0], [0], [1], [0, 0, 1, 1], [], []>} : vector<8x128xf32>, vector<128x384xf32>, vector<8x384xf32> -> vector<8x384xf32>
    %207 = vector.extract_strided_slice %205 {offsets = [0, 0], sizes = [8, 128], strides = [1, 1]} : vector<8x384xf32> to vector<8x128xf32>
    %208 = vector.extract_strided_slice %206 {offsets = [0, 0], sizes = [8, 128], strides = [1, 1]} : vector<8x384xf32> to vector<8x128xf32>
    %209 = arith.addf %207, %208 : vector<8x128xf32>
    %210 = arith.negf %209 : vector<8x128xf32>
    %211 = math.exp %210 : vector<8x128xf32>
    %cst_51 = arith.constant 1.000000e+00 : f32
    %212 = vector.broadcast %cst_51 : f32 to vector<8x128xf32>
    %213 = arith.addf %212, %211 : vector<8x128xf32>
    %214 = arith.divf %212, %213 : vector<8x128xf32>
    %215 = vector.extract_strided_slice %205 {offsets = [0, 128], sizes = [8, 128], strides = [1, 1]} : vector<8x384xf32> to vector<8x128xf32>
    %216 = vector.extract_strided_slice %206 {offsets = [0, 128], sizes = [8, 128], strides = [1, 1]} : vector<8x384xf32> to vector<8x128xf32>
    %217 = arith.addf %215, %216 : vector<8x128xf32>
    %218 = arith.negf %217 : vector<8x128xf32>
    %219 = math.exp %218 : vector<8x128xf32>
    %cst_52 = arith.constant 1.000000e+00 : f32
    %220 = vector.broadcast %cst_52 : f32 to vector<8x128xf32>
    %221 = arith.addf %220, %219 : vector<8x128xf32>
    %222 = arith.divf %220, %221 : vector<8x128xf32>
    %223 = vector.extract_strided_slice %205 {offsets = [0, 256], sizes = [8, 128], strides = [1, 1]} : vector<8x384xf32> to vector<8x128xf32>
    %224 = vector.extract_strided_slice %206 {offsets = [0, 256], sizes = [8, 128], strides = [1, 1]} : vector<8x384xf32> to vector<8x128xf32>
    %225 = arith.addf %224, %5 : vector<8x128xf32>
    %226 = arith.mulf %214, %225 : vector<8x128xf32>
    %227 = arith.addf %223, %226 : vector<8x128xf32>
    %228 = math.tanh %227 : vector<8x128xf32>
    %229 = arith.subf %196, %228 : vector<8x128xf32>
    %230 = arith.mulf %222, %229 : vector<8x128xf32>
    %231 = arith.addf %228, %230 : vector<8x128xf32>
    %232 = arith.addi %6, %c5_i32 : i32
    %233 = vector.broadcast %232 : i32 to vector<8x128xi32>
    %234 = arith.cmpi sgt, %3, %233 : vector<8x128xi32>
    %235 = arith.select %234, %231, %196 : vector<8x128xi1>, vector<8x128xf32>
    %cst_53 = arith.constant 0.000000e+00 : f32
    %236 = vector.broadcast %cst_53 : f32 to vector<8x128xf32>
    %237 = arith.select %234, %231, %236 : vector<8x128xi1>, vector<8x128xf32>
    %238 = arith.index_cast %c5_i32 : i32 to index
    %c0_54 = arith.constant 0 : index
    %c0_55 = arith.constant 0 : index
    %239 = vector.load %arg5[%238, %c0_54, %c0_55] : memref<8x8x128xf32, #tpu.memory_space<vmem>>, vector<1x8x128xf32>
    %240 = vector.shape_cast %239 : vector<1x8x128xf32> to vector<8x128xf32>
    %241 = vector.shape_cast %237 : vector<8x128xf32> to vector<1x8x128xf32>
    tpu.vector_store %arg5[%238, %c0_54, %c0_55], %241 {strides = array<i32>} : memref<8x8x128xf32, #tpu.memory_space<vmem>>, vector<1x8x128xf32>,
    %c6_i32 = arith.constant 6 : i32
    %242 = arith.index_cast %c6_i32 : i32 to index
    %c0_56 = arith.constant 0 : index
    %c0_57 = arith.constant 0 : index
    %243 = vector.load %arg2[%242, %c0_56, %c0_57] : memref<8x8x384xf32, #tpu.memory_space<vmem>>, vector<1x8x384xf32>
    %244 = vector.shape_cast %243 : vector<1x8x384xf32> to vector<8x384xf32>
    %cst_58 = arith.constant dense<0.000000e+00> : vector<8x384xf32>
    %245 = tpu.matmul %235, %4, %cst_58 {dimension_numbers = #tpu.dot_dimension_numbers<[1], [0], [0], [1], [0, 0, 1, 1], [], []>} : vector<8x128xf32>, vector<128x384xf32>, vector<8x384xf32> -> vector<8x384xf32>
    %246 = vector.extract_strided_slice %244 {offsets = [0, 0], sizes = [8, 128], strides = [1, 1]} : vector<8x384xf32> to vector<8x128xf32>
    %247 = vector.extract_strided_slice %245 {offsets = [0, 0], sizes = [8, 128], strides = [1, 1]} : vector<8x384xf32> to vector<8x128xf32>
    %248 = arith.addf %246, %247 : vector<8x128xf32>
    %249 = arith.negf %248 : vector<8x128xf32>
    %250 = math.exp %249 : vector<8x128xf32>
    %cst_59 = arith.constant 1.000000e+00 : f32
    %251 = vector.broadcast %cst_59 : f32 to vector<8x128xf32>
    %252 = arith.addf %251, %250 : vector<8x128xf32>
    %253 = arith.divf %251, %252 : vector<8x128xf32>
    %254 = vector.extract_strided_slice %244 {offsets = [0, 128], sizes = [8, 128], strides = [1, 1]} : vector<8x384xf32> to vector<8x128xf32>
    %255 = vector.extract_strided_slice %245 {offsets = [0, 128], sizes = [8, 128], strides = [1, 1]} : vector<8x384xf32> to vector<8x128xf32>
    %256 = arith.addf %254, %255 : vector<8x128xf32>
    %257 = arith.negf %256 : vector<8x128xf32>
    %258 = math.exp %257 : vector<8x128xf32>
    %cst_60 = arith.constant 1.000000e+00 : f32
    %259 = vector.broadcast %cst_60 : f32 to vector<8x128xf32>
    %260 = arith.addf %259, %258 : vector<8x128xf32>
    %261 = arith.divf %259, %260 : vector<8x128xf32>
    %262 = vector.extract_strided_slice %244 {offsets = [0, 256], sizes = [8, 128], strides = [1, 1]} : vector<8x384xf32> to vector<8x128xf32>
    %263 = vector.extract_strided_slice %245 {offsets = [0, 256], sizes = [8, 128], strides = [1, 1]} : vector<8x384xf32> to vector<8x128xf32>
    %264 = arith.addf %263, %5 : vector<8x128xf32>
    %265 = arith.mulf %253, %264 : vector<8x128xf32>
    %266 = arith.addf %262, %265 : vector<8x128xf32>
    %267 = math.tanh %266 : vector<8x128xf32>
    %268 = arith.subf %235, %267 : vector<8x128xf32>
    %269 = arith.mulf %261, %268 : vector<8x128xf32>
    %270 = arith.addf %267, %269 : vector<8x128xf32>
    %271 = arith.addi %6, %c6_i32 : i32
    %272 = vector.broadcast %271 : i32 to vector<8x128xi32>
    %273 = arith.cmpi sgt, %3, %272 : vector<8x128xi32>
    %274 = arith.select %273, %270, %235 : vector<8x128xi1>, vector<8x128xf32>
    %cst_61 = arith.constant 0.000000e+00 : f32
    %275 = vector.broadcast %cst_61 : f32 to vector<8x128xf32>
    %276 = arith.select %273, %270, %275 : vector<8x128xi1>, vector<8x128xf32>
    %277 = arith.index_cast %c6_i32 : i32 to index
    %c0_62 = arith.constant 0 : index
    %c0_63 = arith.constant 0 : index
    %278 = vector.load %arg5[%277, %c0_62, %c0_63] : memref<8x8x128xf32, #tpu.memory_space<vmem>>, vector<1x8x128xf32>
    %279 = vector.shape_cast %278 : vector<1x8x128xf32> to vector<8x128xf32>
    %280 = vector.shape_cast %276 : vector<8x128xf32> to vector<1x8x128xf32>
    tpu.vector_store %arg5[%277, %c0_62, %c0_63], %280 {strides = array<i32>} : memref<8x8x128xf32, #tpu.memory_space<vmem>>, vector<1x8x128xf32>,
    %c7_i32 = arith.constant 7 : i32
    %281 = arith.index_cast %c7_i32 : i32 to index
    %c0_64 = arith.constant 0 : index
    %c0_65 = arith.constant 0 : index
    %282 = vector.load %arg2[%281, %c0_64, %c0_65] : memref<8x8x384xf32, #tpu.memory_space<vmem>>, vector<1x8x384xf32>
    %283 = vector.shape_cast %282 : vector<1x8x384xf32> to vector<8x384xf32>
    %cst_66 = arith.constant dense<0.000000e+00> : vector<8x384xf32>
    %284 = tpu.matmul %274, %4, %cst_66 {dimension_numbers = #tpu.dot_dimension_numbers<[1], [0], [0], [1], [0, 0, 1, 1], [], []>} : vector<8x128xf32>, vector<128x384xf32>, vector<8x384xf32> -> vector<8x384xf32>
    %285 = vector.extract_strided_slice %283 {offsets = [0, 0], sizes = [8, 128], strides = [1, 1]} : vector<8x384xf32> to vector<8x128xf32>
    %286 = vector.extract_strided_slice %284 {offsets = [0, 0], sizes = [8, 128], strides = [1, 1]} : vector<8x384xf32> to vector<8x128xf32>
    %287 = arith.addf %285, %286 : vector<8x128xf32>
    %288 = arith.negf %287 : vector<8x128xf32>
    %289 = math.exp %288 : vector<8x128xf32>
    %cst_67 = arith.constant 1.000000e+00 : f32
    %290 = vector.broadcast %cst_67 : f32 to vector<8x128xf32>
    %291 = arith.addf %290, %289 : vector<8x128xf32>
    %292 = arith.divf %290, %291 : vector<8x128xf32>
    %293 = vector.extract_strided_slice %283 {offsets = [0, 128], sizes = [8, 128], strides = [1, 1]} : vector<8x384xf32> to vector<8x128xf32>
    %294 = vector.extract_strided_slice %284 {offsets = [0, 128], sizes = [8, 128], strides = [1, 1]} : vector<8x384xf32> to vector<8x128xf32>
    %295 = arith.addf %293, %294 : vector<8x128xf32>
    %296 = arith.negf %295 : vector<8x128xf32>
    %297 = math.exp %296 : vector<8x128xf32>
    %cst_68 = arith.constant 1.000000e+00 : f32
    %298 = vector.broadcast %cst_68 : f32 to vector<8x128xf32>
    %299 = arith.addf %298, %297 : vector<8x128xf32>
    %300 = arith.divf %298, %299 : vector<8x128xf32>
    %301 = vector.extract_strided_slice %283 {offsets = [0, 256], sizes = [8, 128], strides = [1, 1]} : vector<8x384xf32> to vector<8x128xf32>
    %302 = vector.extract_strided_slice %284 {offsets = [0, 256], sizes = [8, 128], strides = [1, 1]} : vector<8x384xf32> to vector<8x128xf32>
    %303 = arith.addf %302, %5 : vector<8x128xf32>
    %304 = arith.mulf %292, %303 : vector<8x128xf32>
    %305 = arith.addf %301, %304 : vector<8x128xf32>
    %306 = math.tanh %305 : vector<8x128xf32>
    %307 = arith.subf %274, %306 : vector<8x128xf32>
    %308 = arith.mulf %300, %307 : vector<8x128xf32>
    %309 = arith.addf %306, %308 : vector<8x128xf32>
    %310 = arith.addi %6, %c7_i32 : i32
    %311 = vector.broadcast %310 : i32 to vector<8x128xi32>
    %312 = arith.cmpi sgt, %3, %311 : vector<8x128xi32>
    %313 = arith.select %312, %309, %274 : vector<8x128xi1>, vector<8x128xf32>
    %cst_69 = arith.constant 0.000000e+00 : f32
    %314 = vector.broadcast %cst_69 : f32 to vector<8x128xf32>
    %315 = arith.select %312, %309, %314 : vector<8x128xi1>, vector<8x128xf32>
    %316 = arith.index_cast %c7_i32 : i32 to index
    %c0_70 = arith.constant 0 : index
    %c0_71 = arith.constant 0 : index
    %317 = vector.load %arg5[%316, %c0_70, %c0_71] : memref<8x8x128xf32, #tpu.memory_space<vmem>>, vector<1x8x128xf32>
    %318 = vector.shape_cast %317 : vector<1x8x128xf32> to vector<8x128xf32>
    %319 = vector.shape_cast %315 : vector<8x128xf32> to vector<1x8x128xf32>
    tpu.vector_store %arg5[%316, %c0_70, %c0_71], %319 {strides = array<i32>} : memref<8x8x128xf32, #tpu.memory_space<vmem>>, vector<1x8x128xf32>,
    %c8_i32_72 = arith.constant 8 : i32
    %c0_73 = arith.constant 0 : index
    %c0_74 = arith.constant 0 : index
    %320 = vector.load %arg7[%c0_73, %c0_74] : memref<8x128xf32, #tpu.memory_space<vmem>>, vector<8x128xf32>
    tpu.vector_store %arg7[%c0_73, %c0_74], %313 {strides = array<i32>} : memref<8x128xf32, #tpu.memory_space<vmem>>, vector<8x128xf32>,
    %c0_i32_75 = arith.constant 0 : i32
    %321 = arith.cmpi eq, %arg0, %c0_i32_75 : i32
    %322 = arith.extui %321 : i1 to i32
    %c0_i32_76 = arith.constant 0 : i32
    %323 = arith.cmpi ne, %322, %c0_i32_76 : i32
    scf.if %323 {
      %c0_77 = arith.constant 0 : index
      %c0_78 = arith.constant 0 : index
      %324 = vector.load %arg6[%c0_77, %c0_78] : memref<8x128xf32, #tpu.memory_space<vmem>>, vector<8x128xf32>
      tpu.vector_store %arg6[%c0_77, %c0_78], %313 {strides = array<i32>} : memref<8x128xf32, #tpu.memory_space<vmem>>, vector<8x128xf32>,
    } else {
    }
    return
  }
  func.func @transform_0(%arg0: i32) -> (i32, i32) {
    %c0_i32 = arith.constant 0 : i32
    %c0_i32_0 = arith.constant 0 : i32
    %c0_i32_1 = arith.constant 0 : i32
    return %c0_i32, %c0_i32_0 : i32, i32
  }
  func.func @transform_1(%arg0: i32) -> (i32, i32, i32) {
    %c0_i32 = arith.constant 0 : i32
    %c0_i32_0 = arith.constant 0 : i32
    %c0_i32_1 = arith.constant 0 : i32
    return %arg0, %c0_i32, %c0_i32_0 : i32, i32, i32
  }
  func.func @transform_2(%arg0: i32) -> (i32, i32) {
    %c0_i32 = arith.constant 0 : i32
    %c0_i32_0 = arith.constant 0 : i32
    %c0_i32_1 = arith.constant 0 : i32
    return %c0_i32, %c0_i32_0 : i32, i32
  }
  func.func @transform_3(%arg0: i32) -> (i32, i32) {
    %c0_i32 = arith.constant 0 : i32
    %c0_i32_0 = arith.constant 0 : i32
    %c0_i32_1 = arith.constant 0 : i32
    return %c0_i32, %c0_i32_0 : i32, i32
  }
  func.func @transform_4(%arg0: i32) -> (i32, i32, i32) {
    %c0_i32 = arith.constant 0 : i32
    %c0_i32_0 = arith.constant 0 : i32
    %c0_i32_1 = arith.constant 0 : i32
    return %arg0, %c0_i32, %c0_i32_0 : i32, i32, i32
  }
  func.func @transform_5(%arg0: i32) -> (i32, i32) {
    %c0_i32 = arith.constant 0 : i32
    %c0_i32_0 = arith.constant 0 : i32
    %c0_i32_1 = arith.constant 0 : i32
    return %c0_i32, %c0_i32_0 : i32, i32
  }
}

module attributes {stable_mosaic.version = 11 : i64} {
  func.func @_proj_kernel(%arg0: i32, %arg1: memref<64x256xf32, #tpu.memory_space<vmem>>, %arg2: memref<256x384xf32, #tpu.memory_space<vmem>>, %arg3: memref<1x384xf32, #tpu.memory_space<vmem>>, %arg4: memref<64x384xf32, #tpu.memory_space<vmem>>) attributes {dimension_semantics = [#tpu.dimension_semantics<parallel>], iteration_bounds = array<i64: 1>, scalar_prefetch = 0 : i64, scratch_operands = 0 : i64, tpu.core_type = #tpu.core_type<tc>, window_params = [{transform_indices = @transform_0, window_bounds = array<i64: 64, 256>}, {pipeline_mode = #tpu.pipeline_mode<synchronous>, transform_indices = @transform_1, window_bounds = array<i64: 256, 384>}, {pipeline_mode = #tpu.pipeline_mode<synchronous>, transform_indices = @transform_2, window_bounds = array<i64: 1, 384>}, {transform_indices = @transform_3, window_bounds = array<i64: 64, 384>}]} {
    %c0 = arith.constant 0 : index
    %c0_0 = arith.constant 0 : index
    %0 = vector.load %arg1[%c0, %c0_0] : memref<64x256xf32, #tpu.memory_space<vmem>>, vector<64x256xf32>
    %c0_1 = arith.constant 0 : index
    %c0_2 = arith.constant 0 : index
    %1 = vector.load %arg2[%c0_1, %c0_2] : memref<256x384xf32, #tpu.memory_space<vmem>>, vector<256x384xf32>
    %cst = arith.constant dense<0.000000e+00> : vector<64x384xf32>
    %2 = tpu.matmul %0, %1, %cst {dimension_numbers = #tpu.dot_dimension_numbers<[1], [0], [0], [1], [0, 0, 1, 1], [], []>} : vector<64x256xf32>, vector<256x384xf32>, vector<64x384xf32> -> vector<64x384xf32>
    %c0_3 = arith.constant 0 : index
    %c0_4 = arith.constant 0 : index
    %3 = vector.load %arg3[%c0_3, %c0_4] : memref<1x384xf32, #tpu.memory_space<vmem>>, vector<1x384xf32>
    %4 = vector.broadcast %3 : vector<1x384xf32> to vector<64x384xf32>
    %5 = arith.addf %2, %4 : vector<64x384xf32>
    %c0_5 = arith.constant 0 : index
    %c0_6 = arith.constant 0 : index
    %6 = vector.load %arg4[%c0_5, %c0_6] : memref<64x384xf32, #tpu.memory_space<vmem>>, vector<64x384xf32>
    tpu.vector_store %arg4[%c0_5, %c0_6], %5 {strides = array<i32>} : memref<64x384xf32, #tpu.memory_space<vmem>>, vector<64x384xf32>,
    return
  }
  func.func @transform_0(%arg0: i32) -> (i32, i32) {
    %c0_i32 = arith.constant 0 : i32
    %c0_i32_0 = arith.constant 0 : i32
    return %arg0, %c0_i32 : i32, i32
  }
  func.func @transform_1(%arg0: i32) -> (i32, i32) {
    %c0_i32 = arith.constant 0 : i32
    %c0_i32_0 = arith.constant 0 : i32
    %c0_i32_1 = arith.constant 0 : i32
    return %c0_i32, %c0_i32_0 : i32, i32
  }
  func.func @transform_2(%arg0: i32) -> (i32, i32) {
    %c0_i32 = arith.constant 0 : i32
    %c0_i32_0 = arith.constant 0 : i32
    %c0_i32_1 = arith.constant 0 : i32
    return %c0_i32, %c0_i32_0 : i32, i32
  }
  func.func @transform_3(%arg0: i32) -> (i32, i32) {
    %c0_i32 = arith.constant 0 : i32
    %c0_i32_0 = arith.constant 0 : i32
    return %arg0, %c0_i32 : i32, i32
  }
}

</mosaic_0001>

<llo_original>
// kernel: encoder_forward.2
$region0: #{encoder_forward.2}
  #allocation0 [shape = 'u32[]', space=smem, size = 0x4, offset = 0x4, fixed_abs, tag = 'smem constant byte address 0x4 - core index']
  #allocation1 [shape = 'u32[72,128]{1,0:T(1,128)}', space=vmem, size = 0x9000, scoped, tag = 'internal scratch']
  %s0 = inlined_call_operand.vmem [shape: f32[64,256], index: 0, kind: input, shape index: {}]
  %s1 = inlined_call_operand.vmem [shape: f32[256,384], index: 1, kind: input, shape index: {}]
  %s2 = inlined_call_operand.vmem [shape: f32[1,384], index: 2, kind: input, shape index: {}]
  %s3 = inlined_call_operand.vmem [shape: f32[64,384], index: 3, kind: output, shape index: {}]
  %s4 = sld [smem:[#allocation0]]
  $region22: #{encoder_forward.2} parent=0
    _
  %s6 = ssub.s32 1, %s4
  %s7 = scalar_select 0, %s6, %s4
  // Predicated region
  $region2: #{encoder_forward.2} parent=0 // pred_check
    _
  $region3: #{encoder_forward.2} parent=0 // pred_check_branch
    %9 = sbr.rel (0) target = $region5
  $region4: #{encoder_forward.2} parent=0 // pred_region
    _
  $region5: #{encoder_forward.2} parent=0 // pred_fallthru
    _
  // Predicated region
  $region6: #{encoder_forward.2} parent=0 // pred_check
    _
  $region7: #{encoder_forward.2} parent=0 // pred_check_branch
    %11 = sbr.rel (0) target = $region9
  $region8: #{encoder_forward.2} parent=0 // pred_region
    _
  $region9: #{encoder_forward.2} parent=0 // pred_fallthru
    _
  // Predicated region
  $region10: #{encoder_forward.2} parent=0 // pred_check
    _
  $region11: #{encoder_forward.2} parent=0 // pred_check_branch
    %13 = sbr.rel (0) target = $region13
  $region12: #{encoder_forward.2} parent=0 // pred_region
    _
  $region13: #{encoder_forward.2} parent=0 // pred_fallthru
    _
  %v14 = vld [vmem:[%s0] sm:$0xff]
  %v15 = vld [vmem:[%s0 + $0x8] sm:$0xff]
  %v16 = vld [vmem:[%s0 + $0x10] sm:$0xff]
  %v17 = vld [vmem:[%s0 + $0x18] sm:$0xff]
  %v18 = vld [vmem:[%s0 + $0x20] sm:$0xff]
  %v19 = vld [vmem:[%s0 + $0x28] sm:$0xff]
  %v20 = vld [vmem:[%s0 + $0x30] sm:$0xff]
  %v21 = vld [vmem:[%s0 + $0x38] sm:$0xff]
  %v22 = vld [vmem:[%s0 + $0x40] sm:$0xff]
  %v23 = vld [vmem:[%s0 + $0x48] sm:$0xff]
  %v24 = vld [vmem:[%s0 + $0x50] sm:$0xff]
  %v25 = vld [vmem:[%s0 + $0x58] sm:$0xff]
  %v26 = vld [vmem:[%s0 + $0x60] sm:$0xff]
  %v27 = vld [vmem:[%s0 + $0x68] sm:$0xff]
  %v28 = vld [vmem:[%s0 + $0x70] sm:$0xff]
  %v29 = vld [vmem:[%s0 + $0x78] sm:$0xff]
  %v30 = vld [vmem:[%s1] sm:$0xff]
  %v31 = vld [vmem:[%s1 + $0x8] sm:$0xff]
  %v32 = vld [vmem:[%s1 + $0x10] sm:$0xff]
  %v33 = vld [vmem:[%s1 + $0x18] sm:$0xff]
  %v34 = vld [vmem:[%s1 + $0x20] sm:$0xff]
  %v35 = vld [vmem:[%s1 + $0x28] sm:$0xff]
  %v36 = vld [vmem:[%s1 + $0x30] sm:$0xff]
  %v37 = vld [vmem:[%s1 + $0x38] sm:$0xff]
  %v38 = vld [vmem:[%s1 + $0x40] sm:$0xff]
  %v39 = vld [vmem:[%s1 + $0x48] sm:$0xff]
  %v40 = vld [vmem:[%s1 + $0x50] sm:$0xff]
  %v41 = vld [vmem:[%s1 + $0x58] sm:$0xff]
  %v42 = vld [vmem:[%s1 + $0x60] sm:$0xff]
  %v43 = vld [vmem:[%s1 + $0x68] sm:$0xff]
  %v44 = vld [vmem:[%s1 + $0x70] sm:$0xff]
  %v45 = vld [vmem:[%s1 + $0x78] sm:$0xff]
  %v46 = vld [vmem:[%s1 + $0x80] sm:$0xff]
  %v47 = vld [vmem:[%s1 + $0x88] sm:$0xff]
  %v48 = vld [vmem:[%s1 + $0x90] sm:$0xff]
  %v49 = vld [vmem:[%s1 + $0x98] sm:$0xff]
  %v50 = vld [vmem:[%s1 + $0xa0] sm:$0xff]
  %v51 = vld [vmem:[%s1 + $0xa8] sm:$0xff]
  %v52 = vld [vmem:[%s1 + $0xb0] sm:$0xff]
  %v53 = vld [vmem:[%s1 + $0xb8] sm:$0xff]
  %v54 = vld [vmem:[%s1 + $0xc0] sm:$0xff]
  %v55 = vld [vmem:[%s1 + $0xc8] sm:$0xff]
  %v56 = vld [vmem:[%s1 + $0xd0] sm:$0xff]
  %v57 = vld [vmem:[%s1 + $0xd8] sm:$0xff]
  %v58 = vld [vmem:[%s1 + $0xe0] sm:$0xff]
  %v59 = vld [vmem:[%s1 + $0xe8] sm:$0xff]
  %v60 = vld [vmem:[%s1 + $0xf0] sm:$0xff]
  %v61 = vld [vmem:[%s1 + $0xf8] sm:$0xff]
  %v62 = vld [vmem:[%s1 + $0x100] sm:$0xff]
  %v63 = vld [vmem:[%s1 + $0x108] sm:$0xff]
  %v64 = vld [vmem:[%s1 + $0x110] sm:$0xff]
  %v65 = vld [vmem:[%s1 + $0x118] sm:$0xff]
  %v66 = vld [vmem:[%s1 + $0x120] sm:$0xff]
  %v67 = vld [vmem:[%s1 + $0x128] sm:$0xff]
  %v68 = vld [vmem:[%s1 + $0x130] sm:$0xff]
  %v69 = vld [vmem:[%s1 + $0x138] sm:$0xff]
  %v70 = vld [vmem:[%s1 + $0x140] sm:$0xff]
  %v71 = vld [vmem:[%s1 + $0x148] sm:$0xff]
  %v72 = vld [vmem:[%s1 + $0x150] sm:$0xff]
  %v73 = vld [vmem:[%s1 + $0x158] sm:$0xff]
  %v74 = vld [vmem:[%s1 + $0x160] sm:$0xff]
  %v75 = vld [vmem:[%s1 + $0x168] sm:$0xff]
  %v76 = vld [vmem:[%s1 + $0x170] sm:$0xff]
  %v77 = vld [vmem:[%s1 + $0x178] sm:$0xff]
  %v78 = vld [vmem:[%s1 + $0x180] sm:$0xff]
  %v79 = vld [vmem:[%s1 + $0x188] sm:$0xff]
  %v80 = vld [vmem:[%s1 + $0x190] sm:$0xff]
  %v81 = vld [vmem:[%s1 + $0x198] sm:$0xff]
  %v82 = vld [vmem:[%s1 + $0x1a0] sm:$0xff]
  %v83 = vld [vmem:[%s1 + $0x1a8] sm:$0xff]
  %v84 = vld [vmem:[%s1 + $0x1b0] sm:$0xff]
  %v85 = vld [vmem:[%s1 + $0x1b8] sm:$0xff]
  %v86 = vld [vmem:[%s1 + $0x1c0] sm:$0xff]
  %v87 = vld [vmem:[%s1 + $0x1c8] sm:$0xff]
  %v88 = vld [vmem:[%s1 + $0x1d0] sm:$0xff]
  %v89 = vld [vmem:[%s1 + $0x1d8] sm:$0xff]
  %v90 = vld [vmem:[%s1 + $0x1e0] sm:$0xff]
  %v91 = vld [vmem:[%s1 + $0x1e8] sm:$0xff]
  %v92 = vld [vmem:[%s1 + $0x1f0] sm:$0xff]
  %v93 = vld [vmem:[%s1 + $0x1f8] sm:$0xff]
  %v94 = vld [vmem:[%s1 + $0x200] sm:$0xff]
  %v95 = vld [vmem:[%s1 + $0x208] sm:$0xff]
  %v96 = vld [vmem:[%s1 + $0x210] sm:$0xff]
  %v97 = vld [vmem:[%s1 + $0x218] sm:$0xff]
  %v98 = vld [vmem:[%s1 + $0x220] sm:$0xff]
  %v99 = vld [vmem:[%s1 + $0x228] sm:$0xff]
  %v100 = vld [vmem:[%s1 + $0x230] sm:$0xff]
  %v101 = vld [vmem:[%s1 + $0x238] sm:$0xff]
  %v102 = vld [vmem:[%s1 + $0x240] sm:$0xff]
  %v103 = vld [vmem:[%s1 + $0x248] sm:$0xff]
  %v104 = vld [vmem:[%s1 + $0x250] sm:$0xff]
  %v105 = vld [vmem:[%s1 + $0x258] sm:$0xff]
  %v106 = vld [vmem:[%s1 + $0x260] sm:$0xff]
  %v107 = vld [vmem:[%s1 + $0x268] sm:$0xff]
  %v108 = vld [vmem:[%s1 + $0x270] sm:$0xff]
  %v109 = vld [vmem:[%s1 + $0x278] sm:$0xff]
  %v110 = vld [vmem:[%s1 + $0x280] sm:$0xff]
  %v111 = vld [vmem:[%s1 + $0x288] sm:$0xff]
  %v112 = vld [vmem:[%s1 + $0x290] sm:$0xff]
  %v113 = vld [vmem:[%s1 + $0x298] sm:$0xff]
  %v114 = vld [vmem:[%s1 + $0x2a0] sm:$0xff]
  %v115 = vld [vmem:[%s1 + $0x2a8] sm:$0xff]
  %v116 = vld [vmem:[%s1 + $0x2b0] sm:$0xff]
  %v117 = vld [vmem:[%s1 + $0x2b8] sm:$0xff]
  %v118 = vld [vmem:[%s1 + $0x2c0] sm:$0xff]
  %v119 = vld [vmem:[%s1 + $0x2c8] sm:$0xff]
  %v120 = vld [vmem:[%s1 + $0x2d0] sm:$0xff]
  %v121 = vld [vmem:[%s1 + $0x2d8] sm:$0xff]
  %v122 = vld [vmem:[%s1 + $0x2e0] sm:$0xff]
  %v123 = vld [vmem:[%s1 + $0x2e8] sm:$0xff]
  %v124 = vld [vmem:[%s1 + $0x2f0] sm:$0xff]
  %v125 = vld [vmem:[%s1 + $0x2f8] sm:$0xff]
  %v126 = vld [vmem:[%s2] sm:$0x7]
  %v128 = vperm.slane %v126, 0
  %v129 = vperm.slane %v126, 1
  %v130 = vperm.slane %v126, 2
  %134 = vmatpush.msra.mxu0 %v75
  %135 = vmatpush.msra.mxu0 %v72
  %136 = vmatpush.msra.mxu0 %v69
  %137 = vmatpush.msra.mxu0 %v66
  %138 = vmatpush.msra.mxu0 %v63
  %139 = vmatpush.msra.mxu0 %v60
  %140 = vmatpush.msra.mxu0 %v57
  %141 = vmatpush.msra.mxu0 %v54
  %142 = vmatpush.msra.mxu0 %v51
  %143 = vmatpush.msra.mxu0 %v48
  %144 = vmatpush.msra.mxu0 %v45
  %145 = vmatpush.msra.mxu0 %v42
  %146 = vmatpush.msra.mxu0 %v39
  %147 = vmatpush.msra.mxu0 %v36
  %148 = vmatpush.msra.mxu0 %v33
  %149 = vmatpush.msra.mxu0 %v30
  %150 = vmatmul.f32.gmra.mxu0 %v14
  %v151 = vpop.f32.mrf.mxu0
  %v152 = vadd.f32 %v128, %v151
  %153 = vmatmul.f32.gmra.mxu0 %v16
  %v154 = vpop.f32.mrf.mxu0
  %v155 = vadd.f32 %v128, %v154
  %156 = vmatmul.f32.gmra.mxu0 %v18
  %v157 = vpop.f32.mrf.mxu0
  %v158 = vadd.f32 %v128, %v157
  %159 = vmatmul.f32.gmra.mxu0 %v20
  %v160 = vpop.f32.mrf.mxu0
  %v161 = vadd.f32 %v128, %v160
  %162 = vmatmul.f32.gmra.mxu0 %v22
  %v163 = vpop.f32.mrf.mxu0
  %v164 = vadd.f32 %v128, %v163
  %165 = vmatmul.f32.gmra.mxu0 %v24
  %v166 = vpop.f32.mrf.mxu0
  %v167 = vadd.f32 %v128, %v166
  %168 = vmatmul.f32.gmra.mxu0 %v26
  %v169 = vpop.f32.mrf.mxu0
  %v170 = vadd.f32 %v128, %v169
  %171 = vmatmul.f32.gmra.mxu0 %v28
  %v172 = vpop.f32.mrf.mxu0
  %v173 = vadd.f32 %v128, %v172
  %174 = vdwg.mxu0
  %175 = vmatpush.msra.mxu0 %v123
  %176 = vmatpush.msra.mxu0 %v120
  %177 = vmatpush.msra.mxu0 %v117
  %178 = vmatpush.msra.mxu0 %v114
  %179 = vmatpush.msra.mxu0 %v111
  %180 = vmatpush.msra.mxu0 %v108
  %181 = vmatpush.msra.mxu0 %v105
  %182 = vmatpush.msra.mxu0 %v102
  %183 = vmatpush.msra.mxu0 %v99
  %184 = vmatpush.msra.mxu0 %v96
  %185 = vmatpush.msra.mxu0 %v93
  %186 = vmatpush.msra.mxu0 %v90
  %187 = vmatpush.msra.mxu0 %v87
  %188 = vmatpush.msra.mxu0 %v84
  %189 = vmatpush.msra.mxu0 %v81
  %190 = vmatpush.msra.mxu0 %v78
  %191 = vmatmul.f32.gmra.mxu0 %v15
  %v192 = vpop.f32.mrf.mxu0
  %v193 = vadd.f32 %v152, %v192
  %194 = vmatmul.f32.gmra.mxu0 %v17
  %v195 = vpop.f32.mrf.mxu0
  %v196 = vadd.f32 %v155, %v195
  %197 = vmatmul.f32.gmra.mxu0 %v19
  %v198 = vpop.f32.mrf.mxu0
  %v199 = vadd.f32 %v158, %v198
  %200 = vmatmul.f32.gmra.mxu0 %v21
  %v201 = vpop.f32.mrf.mxu0
  %v202 = vadd.f32 %v161, %v201
  %203 = vmatmul.f32.gmra.mxu0 %v23
  %v204 = vpop.f32.mrf.mxu0
  %v205 = vadd.f32 %v164, %v204
  %206 = vmatmul.f32.gmra.mxu0 %v25
  %v207 = vpop.f32.mrf.mxu0
  %v208 = vadd.f32 %v167, %v207
  %209 = vmatmul.f32.gmra.mxu0 %v27
  %v210 = vpop.f32.mrf.mxu0
  %v211 = vadd.f32 %v170, %v210
  %212 = vmatmul.f32.gmra.mxu0 %v29
  %v213 = vpop.f32.mrf.mxu0
  %v214 = vadd.f32 %v173, %v213
  %215 = vdwg.mxu0
  %216 = vmatpush.msra.mxu0 %v76
  %217 = vmatpush.msra.mxu0 %v73
  %218 = vmatpush.msra.mxu0 %v70
  %219 = vmatpush.msra.mxu0 %v67
  %220 = vmatpush.msra.mxu0 %v64
  %221 = vmatpush.msra.mxu0 %v61
  %222 = vmatpush.msra.mxu0 %v58
  %223 = vmatpush.msra.mxu0 %v55
  %224 = vmatpush.msra.mxu0 %v52
  %225 = vmatpush.msra.mxu0 %v49
  %226 = vmatpush.msra.mxu0 %v46
  %227 = vmatpush.msra.mxu0 %v43
  %228 = vmatpush.msra.mxu0 %v40
  %229 = vmatpush.msra.mxu0 %v37
  %230 = vmatpush.msra.mxu0 %v34
  %231 = vmatpush.msra.mxu0 %v31
  %232 = vmatmul.f32.gmra.mxu0 %v14
  %v233 = vpop.f32.mrf.mxu0
  %v234 = vadd.f32 %v129, %v233
  %235 = vmatmul.f32.gmra.mxu0 %v16
  %v236 = vpop.f32.mrf.mxu0
  %v237 = vadd.f32 %v129, %v236
  %238 = vmatmul.f32.gmra.mxu0 %v18
  %v239 = vpop.f32.mrf.mxu0
  %v240 = vadd.f32 %v129, %v239
  %241 = vmatmul.f32.gmra.mxu0 %v20
  %v242 = vpop.f32.mrf.mxu0
  %v243 = vadd.f32 %v129, %v242
  %244 = vmatmul.f32.gmra.mxu0 %v22
  %v245 = vpop.f32.mrf.mxu0
  %v246 = vadd.f32 %v129, %v245
  %247 = vmatmul.f32.gmra.mxu0 %v24
  %v248 = vpop.f32.mrf.mxu0
  %v249 = vadd.f32 %v129, %v248
  %250 = vmatmul.f32.gmra.mxu0 %v26
  %v251 = vpop.f32.mrf.mxu0
  %v252 = vadd.f32 %v129, %v251
  %253 = vmatmul.f32.gmra.mxu0 %v28
  %v254 = vpop.f32.mrf.mxu0
  %v255 = vadd.f32 %v129, %v254
  %256 = vdwg.mxu0
  %257 = vmatpush.msra.mxu0 %v124
  %258 = vmatpush.msra.mxu0 %v121
  %259 = vmatpush.msra.mxu0 %v118
  %260 = vmatpush.msra.mxu0 %v115
  %261 = vmatpush.msra.mxu0 %v112
  %262 = vmatpush.msra.mxu0 %v109
  %263 = vmatpush.msra.mxu0 %v106
  %264 = vmatpush.msra.mxu0 %v103
  %265 = vmatpush.msra.mxu0 %v100
  %266 = vmatpush.msra.mxu0 %v97
  %267 = vmatpush.msra.mxu0 %v94
  %268 = vmatpush.msra.mxu0 %v91
  %269 = vmatpush.msra.mxu0 %v88
  %270 = vmatpush.msra.mxu0 %v85
  %271 = vmatpush.msra.mxu0 %v82
  %272 = vmatpush.msra.mxu0 %v79
  %273 = vmatmul.f32.gmra.mxu0 %v15
  %v274 = vpop.f32.mrf.mxu0
  %v275 = vadd.f32 %v234, %v274
  %276 = vmatmul.f32.gmra.mxu0 %v17
  %v277 = vpop.f32.mrf.mxu0
  %v278 = vadd.f32 %v237, %v277
  %279 = vmatmul.f32.gmra.mxu0 %v19
  %v280 = vpop.f32.mrf.mxu0
  %v281 = vadd.f32 %v240, %v280
  %282 = vmatmul.f32.gmra.mxu0 %v21
  %v283 = vpop.f32.mrf.mxu0
  %v284 = vadd.f32 %v243, %v283
  %285 = vmatmul.f32.gmra.mxu0 %v23
  %v286 = vpop.f32.mrf.mxu0
  %v287 = vadd.f32 %v246, %v286
  %288 = vmatmul.f32.gmra.mxu0 %v25
  %v289 = vpop.f32.mrf.mxu0
  %v290 = vadd.f32 %v249, %v289
  %291 = vmatmul.f32.gmra.mxu0 %v27
  %v292 = vpop.f32.mrf.mxu0
  %v293 = vadd.f32 %v252, %v292
  %294 = vmatmul.f32.gmra.mxu0 %v29
  %v295 = vpop.f32.mrf.mxu0
  %v296 = vadd.f32 %v255, %v295
  %297 = vdwg.mxu0
  %298 = vmatpush.msra.mxu0 %v77
  %299 = vmatpush.msra.mxu0 %v74
  %300 = vmatpush.msra.mxu0 %v71
  %301 = vmatpush.msra.mxu0 %v68
  %302 = vmatpush.msra.mxu0 %v65
  %303 = vmatpush.msra.mxu0 %v62
  %304 = vmatpush.msra.mxu0 %v59
  %305 = vmatpush.msra.mxu0 %v56
  %306 = vmatpush.msra.mxu0 %v53
  %307 = vmatpush.msra.mxu0 %v50
  %308 = vmatpush.msra.mxu0 %v47
  %309 = vmatpush.msra.mxu0 %v44
  %310 = vmatpush.msra.mxu0 %v41
  %311 = vmatpush.msra.mxu0 %v38
  %312 = vmatpush.msra.mxu0 %v35
  %313 = vmatpush.msra.mxu0 %v32
  %314 = vmatmul.f32.gmra.mxu0 %v14
  %v315 = vpop.f32.mrf.mxu0
  %v316 = vadd.f32 %v130, %v315
  %317 = vmatmul.f32.gmra.mxu0 %v16
  %v318 = vpop.f32.mrf.mxu0
  %v319 = vadd.f32 %v130, %v318
  %320 = vmatmul.f32.gmra.mxu0 %v18
  %v321 = vpop.f32.mrf.mxu0
  %v322 = vadd.f32 %v130, %v321
  %323 = vmatmul.f32.gmra.mxu0 %v20
  %v324 = vpop.f32.mrf.mxu0
  %v325 = vadd.f32 %v130, %v324
  %326 = vmatmul.f32.gmra.mxu0 %v22
  %v327 = vpop.f32.mrf.mxu0
  %v328 = vadd.f32 %v130, %v327
  %329 = vmatmul.f32.gmra.mxu0 %v24
  %v330 = vpop.f32.mrf.mxu0
  %v331 = vadd.f32 %v130, %v330
  %332 = vmatmul.f32.gmra.mxu0 %v26
  %v333 = vpop.f32.mrf.mxu0
  %v334 = vadd.f32 %v130, %v333
  %335 = vmatmul.f32.gmra.mxu0 %v28
  %v336 = vpop.f32.mrf.mxu0
  %v337 = vadd.f32 %v130, %v336
  %338 = vdwg.mxu0
  %339 = vmatpush.msra.mxu0 %v125
  %340 = vmatpush.msra.mxu0 %v122
  %341 = vmatpush.msra.mxu0 %v119
  %342 = vmatpush.msra.mxu0 %v116
  %343 = vmatpush.msra.mxu0 %v113
  %344 = vmatpush.msra.mxu0 %v110
  %345 = vmatpush.msra.mxu0 %v107
  %346 = vmatpush.msra.mxu0 %v104
  %347 = vmatpush.msra.mxu0 %v101
  %348 = vmatpush.msra.mxu0 %v98
  %349 = vmatpush.msra.mxu0 %v95
  %350 = vmatpush.msra.mxu0 %v92
  %351 = vmatpush.msra.mxu0 %v89
  %352 = vmatpush.msra.mxu0 %v86
  %353 = vmatpush.msra.mxu0 %v83
  %354 = vmatpush.msra.mxu0 %v80
  %355 = vmatmul.f32.gmra.mxu0 %v15
  %v356 = vpop.f32.mrf.mxu0
  %v357 = vadd.f32 %v316, %v356
  %358 = vmatmul.f32.gmra.mxu0 %v17
  %v359 = vpop.f32.mrf.mxu0
  %v360 = vadd.f32 %v319, %v359
  %361 = vmatmul.f32.gmra.mxu0 %v19
  %v362 = vpop.f32.mrf.mxu0
  %v363 = vadd.f32 %v322, %v362
  %364 = vmatmul.f32.gmra.mxu0 %v21
  %v365 = vpop.f32.mrf.mxu0
  %v366 = vadd.f32 %v325, %v365
  %367 = vmatmul.f32.gmra.mxu0 %v23
  %v368 = vpop.f32.mrf.mxu0
  %v369 = vadd.f32 %v328, %v368
  %370 = vmatmul.f32.gmra.mxu0 %v25
  %v371 = vpop.f32.mrf.mxu0
  %v372 = vadd.f32 %v331, %v371
  %373 = vmatmul.f32.gmra.mxu0 %v27
  %v374 = vpop.f32.mrf.mxu0
  %v375 = vadd.f32 %v334, %v374
  %376 = vmatmul.f32.gmra.mxu0 %v29
  %v377 = vpop.f32.mrf.mxu0
  %v378 = vadd.f32 %v337, %v377
  %379 = vdwg.mxu0
  %380 = vst [vmem:[%s3] sm:$0xff] %v193
  %381 = vst [vmem:[%s3 + $0x8] sm:$0xff] %v275
  %382 = vst [vmem:[%s3 + $0x10] sm:$0xff] %v357
  %383 = vst [vmem:[%s3 + $0x18] sm:$0xff] %v196
  %384 = vst [vmem:[%s3 + $0x20] sm:$0xff] %v278
  %385 = vst [vmem:[%s3 + $0x28] sm:$0xff] %v360
  %386 = vst [vmem:[%s3 + $0x30] sm:$0xff] %v199
  %387 = vst [vmem:[%s3 + $0x38] sm:$0xff] %v281
  %388 = vst [vmem:[%s3 + $0x40] sm:$0xff] %v363
  %389 = vst [vmem:[%s3 + $0x48] sm:$0xff] %v202
  %390 = vst [vmem:[%s3 + $0x50] sm:$0xff] %v284
  %391 = vst [vmem:[%s3 + $0x58] sm:$0xff] %v366
  %392 = vst [vmem:[%s3 + $0x60] sm:$0xff] %v205
  %393 = vst [vmem:[%s3 + $0x68] sm:$0xff] %v287
  %394 = vst [vmem:[%s3 + $0x70] sm:$0xff] %v369
  %395 = vst [vmem:[%s3 + $0x78] sm:$0xff] %v208
  %396 = vst [vmem:[%s3 + $0x80] sm:$0xff] %v290
  %397 = vst [vmem:[%s3 + $0x88] sm:$0xff] %v372
  %398 = vst [vmem:[%s3 + $0x90] sm:$0xff] %v211
  %399 = vst [vmem:[%s3 + $0x98] sm:$0xff] %v293
  %400 = vst [vmem:[%s3 + $0xa0] sm:$0xff] %v375
  %401 = vst [vmem:[%s3 + $0xa8] sm:$0xff] %v214
  %402 = vst [vmem:[%s3 + $0xb0] sm:$0xff] %v296
  %403 = vst [vmem:[%s3 + $0xb8] sm:$0xff] %v378
  // Predicated region
  $region14: #{encoder_forward.2} parent=0 // pred_check
    _
  $region15: #{encoder_forward.2} parent=0 // pred_check_branch
    %405 = sbr.rel (0) target = $region17
  $region16: #{encoder_forward.2} parent=0 // pred_region
    _
  $region17: #{encoder_forward.2} parent=0 // pred_fallthru
    _
  // Predicated region
  $region18: #{encoder_forward.2} parent=0 // pred_check
    _
  $region19: #{encoder_forward.2} parent=0 // pred_check_branch
    %407 = sbr.rel (0) target = $region21
  $region20: #{encoder_forward.2} parent=0 // pred_region
    _
  $region21: #{encoder_forward.2} parent=0 // pred_fallthru
    _

// kernel: encoder_forward.3
$region0: #{encoder_forward.3}
  #allocation0 [shape = 'u32[]', space=smem, size = 0x4, offset = 0x4, fixed_abs, tag = 'smem constant byte address 0x4 - core index']
  #allocation1 [shape = 'u32[72,128]{1,0:T(1,128)}', space=vmem, size = 0x9000, scoped, tag = 'internal scratch']
  #allocation2 [shape = 'f32[8,128]{1,0:T(8,128)}', space=vmem, size = 0x1000, scoped, tag = 'scratch operand']
  %s0 = inlined_call_operand.vmem [shape: s32[8,128], index: 0, kind: input, shape index: {}]
  %s1 = inlined_call_operand.vmem [shape: f32[8,8,384], index: 1, kind: input, shape index: {}]
  %s2 = inlined_call_operand.vmem [shape: f32[128,384], index: 2, kind: input, shape index: {}]
  %s3 = inlined_call_operand.vmem [shape: f32[8,128], index: 3, kind: input, shape index: {}]
  %s4 = inlined_call_operand.vmem [shape: f32[8,8,128], index: 4, kind: output, shape index: {0}]
  %s5 = inlined_call_operand.vmem [shape: f32[8,128], index: 5, kind: output, shape index: {1}]
  %6 = xla_tuple %s4, %s5
  %s7 = sld [smem:[#allocation0]]
  $region42: #{encoder_forward.3} parent=0
    _
  %s9 = ssub.s32 1, %s7
  %s10 = scalar_select 0, %s9, %s7
  // Predicated region
  $region2: #{encoder_forward.3} parent=0 // pred_check
    _
  $region3: #{encoder_forward.3} parent=0 // pred_check_branch
    %12 = sbr.rel (0) target = $region5
  $region4: #{encoder_forward.3} parent=0 // pred_region
    _
  $region5: #{encoder_forward.3} parent=0 // pred_fallthru
    _
  // Predicated region
  $region6: #{encoder_forward.3} parent=0 // pred_check
    _
  $region7: #{encoder_forward.3} parent=0 // pred_check_branch
    %14 = sbr.rel (0) target = $region9
  $region8: #{encoder_forward.3} parent=0 // pred_region
    _
  $region9: #{encoder_forward.3} parent=0 // pred_fallthru
    _
  // Predicated region
  $region10: #{encoder_forward.3} parent=0 // pred_check
    _
  $region11: #{encoder_forward.3} parent=0 // pred_check_branch
    %16 = sbr.rel (0) target = $region13
  $region12: #{encoder_forward.3} parent=0 // pred_region
    _
  $region13: #{encoder_forward.3} parent=0 // pred_fallthru
    _
  // Predicated region
  $region14: #{encoder_forward.3} parent=0 // pred_check
    _
  $region15: #{encoder_forward.3} parent=0 // pred_check_branch
    %18 = sbr.rel (0) target = $region17
  $region16: #{encoder_forward.3} parent=0 // pred_region
    _
  $region17: #{encoder_forward.3} parent=0 // pred_fallthru
    _
  %p19 = scmp.eq.s32.totalorder 0, 0
  // Predicated region
  $region18: #{encoder_forward.3} parent=0 // pred_check
    %p20 = pneg %p19
  $region19: #{encoder_forward.3} parent=0 // pred_check_branch
    %22 = sbr.rel (%p20) target = $region21
  $region20: #{encoder_forward.3} parent=0 // pred_region
    %23 = vst [vmem:[#allocation2] sm:$0xff] 0.0
  $region21: #{encoder_forward.3} parent=0 // pred_fallthru
    _
  %v24 = vld [vmem:[%s0] sm:$0xff]
  %v25 = vld [vmem:[%s2] sm:$0xff]
  %v26 = vld [vmem:[%s2 + $0x8] sm:$0xff]
  %v27 = vld [vmem:[%s2 + $0x10] sm:$0xff]
  %v28 = vld [vmem:[%s2 + $0x18] sm:$0xff]
  %v29 = vld [vmem:[%s2 + $0x20] sm:$0xff]
  %v30 = vld [vmem:[%s2 + $0x28] sm:$0xff]
  %v31 = vld [vmem:[%s2 + $0x30] sm:$0xff]
  %v32 = vld [vmem:[%s2 + $0x38] sm:$0xff]
  %v33 = vld [vmem:[%s2 + $0x40] sm:$0xff]
  %v34 = vld [vmem:[%s2 + $0x48] sm:$0xff]
  %v35 = vld [vmem:[%s2 + $0x50] sm:$0xff]
  %v36 = vld [vmem:[%s2 + $0x58] sm:$0xff]
  %v37 = vld [vmem:[%s2 + $0x60] sm:$0xff]
  %v38 = vld [vmem:[%s2 + $0x68] sm:$0xff]
  %v39 = vld [vmem:[%s2 + $0x70] sm:$0xff]
  %v40 = vld [vmem:[%s2 + $0x78] sm:$0xff]
  %v41 = vld [vmem:[%s2 + $0x80] sm:$0xff]
  %v42 = vld [vmem:[%s2 + $0x88] sm:$0xff]
  %v43 = vld [vmem:[%s2 + $0x90] sm:$0xff]
  %v44 = vld [vmem:[%s2 + $0x98] sm:$0xff]
  %v45 = vld [vmem:[%s2 + $0xa0] sm:$0xff]
  %v46 = vld [vmem:[%s2 + $0xa8] sm:$0xff]
  %v47 = vld [vmem:[%s2 + $0xb0] sm:$0xff]
  %v48 = vld [vmem:[%s2 + $0xb8] sm:$0xff]
  %v49 = vld [vmem:[%s2 + $0xc0] sm:$0xff]
  %v50 = vld [vmem:[%s2 + $0xc8] sm:$0xff]
  %v51 = vld [vmem:[%s2 + $0xd0] sm:$0xff]
  %v52 = vld [vmem:[%s2 + $0xd8] sm:$0xff]
  %v53 = vld [vmem:[%s2 + $0xe0] sm:$0xff]
  %v54 = vld [vmem:[%s2 + $0xe8] sm:$0xff]
  %v55 = vld [vmem:[%s2 + $0xf0] sm:$0xff]
  %v56 = vld [vmem:[%s2 + $0xf8] sm:$0xff]
  %v57 = vld [vmem:[%s2 + $0x100] sm:$0xff]
  %v58 = vld [vmem:[%s2 + $0x108] sm:$0xff]
  %v59 = vld [vmem:[%s2 + $0x110] sm:$0xff]
  %v60 = vld [vmem:[%s2 + $0x118] sm:$0xff]
  %v61 = vld [vmem:[%s2 + $0x120] sm:$0xff]
  %v62 = vld [vmem:[%s2 + $0x128] sm:$0xff]
  %v63 = vld [vmem:[%s2 + $0x130] sm:$0xff]
  %v64 = vld [vmem:[%s2 + $0x138] sm:$0xff]
  %v65 = vld [vmem:[%s2 + $0x140] sm:$0xff]
  %v66 = vld [vmem:[%s2 + $0x148] sm:$0xff]
  %v67 = vld [vmem:[%s2 + $0x150] sm:$0xff]
  %v68 = vld [vmem:[%s2 + $0x158] sm:$0xff]
  %v69 = vld [vmem:[%s2 + $0x160] sm:$0xff]
  %v70 = vld [vmem:[%s2 + $0x168] sm:$0xff]
  %v71 = vld [vmem:[%s2 + $0x170] sm:$0xff]
  %v72 = vld [vmem:[%s2 + $0x178] sm:$0xff]
  %v73 = vld [vmem:[%s3] sm:$0xff]
  %s74 = smul.u32 0, 8
  %v75 = vld [vmem:[#allocation2] sm:$0xff]
  %v76 = vld [vmem:[%s1] sm:$0xff]
  %v77 = vld [vmem:[%s1 + $0x8] sm:$0xff]
  %v78 = vld [vmem:[%s1 + $0x10] sm:$0xff]
  %79 = vmatpush.msra.mxu0 %v70
  %80 = vmatpush.msra.mxu0 %v67
  %81 = vmatpush.msra.mxu0 %v64
  %82 = vmatpush.msra.mxu0 %v61
  %83 = vmatpush.msra.mxu0 %v58
  %84 = vmatpush.msra.mxu0 %v55
  %85 = vmatpush.msra.mxu0 %v52
  %86 = vmatpush.msra.mxu0 %v49
  %87 = vmatpush.msra.mxu0 %v46
  %88 = vmatpush.msra.mxu0 %v43
  %89 = vmatpush.msra.mxu0 %v40
  %90 = vmatpush.msra.mxu0 %v37
  %91 = vmatpush.msra.mxu0 %v34
  %92 = vmatpush.msra.mxu0 %v31
  %93 = vmatpush.msra.mxu0 %v28
  %94 = vmatpush.msra.mxu0 %v25
  %95 = vmatmul.f32.gmra.mxu0 %v75
  %v96 = vpop.f32.mrf.mxu0
  %v97 = vadd.f32 0.0, %v96
  %98 = vdwg.mxu0
  %99 = vmatpush.msra.mxu0 %v71
  %100 = vmatpush.msra.mxu0 %v68
  %101 = vmatpush.msra.mxu0 %v65
  %102 = vmatpush.msra.mxu0 %v62
  %103 = vmatpush.msra.mxu0 %v59
  %104 = vmatpush.msra.mxu0 %v56
  %105 = vmatpush.msra.mxu0 %v53
  %106 = vmatpush.msra.mxu0 %v50
  %107 = vmatpush.msra.mxu0 %v47
  %108 = vmatpush.msra.mxu0 %v44
  %109 = vmatpush.msra.mxu0 %v41
  %110 = vmatpush.msra.mxu0 %v38
  %111 = vmatpush.msra.mxu0 %v35
  %112 = vmatpush.msra.mxu0 %v32
  %113 = vmatpush.msra.mxu0 %v29
  %114 = vmatpush.msra.mxu0 %v26
  %115 = vmatmul.f32.gmra.mxu0 %v75
  %v116 = vpop.f32.mrf.mxu0
  %v117 = vadd.f32 0.0, %v116
  %118 = vdwg.mxu0
  %119 = vmatpush.msra.mxu0 %v72
  %120 = vmatpush.msra.mxu0 %v69
  %121 = vmatpush.msra.mxu0 %v66
  %122 = vmatpush.msra.mxu0 %v63
  %123 = vmatpush.msra.mxu0 %v60
  %124 = vmatpush.msra.mxu0 %v57
  %125 = vmatpush.msra.mxu0 %v54
  %126 = vmatpush.msra.mxu0 %v51
  %127 = vmatpush.msra.mxu0 %v48
  %128 = vmatpush.msra.mxu0 %v45
  %129 = vmatpush.msra.mxu0 %v42
  %130 = vmatpush.msra.mxu0 %v39
  %131 = vmatpush.msra.mxu0 %v36
  %132 = vmatpush.msra.mxu0 %v33
  %133 = vmatpush.msra.mxu0 %v30
  %134 = vmatpush.msra.mxu0 %v27
  %135 = vmatmul.f32.gmra.mxu0 %v75
  %v136 = vpop.f32.mrf.mxu0
  %v137 = vadd.f32 0.0, %v136
  %138 = vdwg.mxu0
  %v139 = vadd.f32 %v76, %v97
  %v140 = vxor.u32 %v139, 2147483648
  %v141 = vmul.f32 %v140, 1.442695
  %v142 = vpow.pop %v141
  %v143 = vadd.f32 %v142, 1.0
  %v144 = vrcp.pop %v143
  %v145 = vmul.f32 %v143, %v144
  %v146 = vsub.f32 1.0, %v145
  %v147 = vmul.f32 %v144, %v146
  %v148 = vadd.f32 %v144, %v147
  %vm149 = vweird.f32 %v143
  %vm150 = vweird.f32 %v144
  %vm151 = vmor %vm149, %vm150
  %v152 = vsel %vm151, %v144, %v148
  %v153 = vand.u32 2147483647, %v143
  %vm154 = vcmp.eq.f32.partialorder %v153, 8.507059e+37
  %v155 = vand.u32 %v143, 2147483648
  %v156 = vor.u32 1.1754944e-38, %v155
  %v157 = vsel %vm154, %v156, %v152
  %v158 = vmul.f32 1.0, %v157
  %v159 = vadd.f32 %v77, %v117
  %v160 = vxor.u32 %v159, 2147483648
  %v161 = vmul.f32 %v160, 1.442695
  %v162 = vpow.pop %v161
  %v163 = vadd.f32 %v162, 1.0
  %v164 = vrcp.pop %v163
  %v165 = vmul.f32 %v163, %v164
  %v166 = vsub.f32 1.0, %v165
  %v167 = vmul.f32 %v164, %v166
  %v168 = vadd.f32 %v164, %v167
  %vm169 = vweird.f32 %v163
  %vm170 = vweird.f32 %v164
  %vm171 = vmor %vm169, %vm170
  %v172 = vsel %vm171, %v164, %v168
  %v173 = vand.u32 2147483647, %v163
  %vm174 = vcmp.eq.f32.partialorder %v173, 8.507059e+37
  %v175 = vand.u32 %v163, 2147483648
  %v176 = vor.u32 1.1754944e-38, %v175
  %v177 = vsel %vm174, %v176, %v172
  %v178 = vmul.f32 1.0, %v177
  %v179 = vadd.f32 %v137, %v73
  %v180 = vmul.f32 %v158, %v179
  %v181 = vadd.f32 %v78, %v180
  %v182 = vtanh.pop %v181
  %v183 = vsub.f32 %v75, %v182
  %v184 = vmul.f32 %v178, %v183
  %v185 = vadd.f32 %v182, %v184
  %v186 = vstv %s74
  %vm187 = vcmp.gt.s32.totalorder %v24, %v186
  %v188 = vsel %vm187, %v185, %v75
  %v189 = vsel %vm187, %v185, 0.0
  %190 = vst [vmem:[%s4] sm:$0xff] %v189
  %s191 = scalar_lea.vmem %s1, 24
  %v192 = vld [vmem:[%s191] sm:$0xff]
  %v193 = vld [vmem:[%s191 + $0x8] sm:$0xff]
  %v194 = vld [vmem:[%s191 + $0x10] sm:$0xff]
  %195 = vmatpush.msra.mxu0 %v70
  %196 = vmatpush.msra.mxu0 %v67
  %197 = vmatpush.msra.mxu0 %v64
  %198 = vmatpush.msra.mxu0 %v61
  %199 = vmatpush.msra.mxu0 %v58
  %200 = vmatpush.msra.mxu0 %v55
  %201 = vmatpush.msra.mxu0 %v52
  %202 = vmatpush.msra.mxu0 %v49
  %203 = vmatpush.msra.mxu0 %v46
  %204 = vmatpush.msra.mxu0 %v43
  %205 = vmatpush.msra.mxu0 %v40
  %206 = vmatpush.msra.mxu0 %v37
  %207 = vmatpush.msra.mxu0 %v34
  %208 = vmatpush.msra.mxu0 %v31
  %209 = vmatpush.msra.mxu0 %v28
  %210 = vmatpush.msra.mxu0 %v25
  %211 = vmatmul.f32.gmra.mxu0 %v188
  %v212 = vpop.f32.mrf.mxu0
  %v213 = vadd.f32 0.0, %v212
  %214 = vdwg.mxu0
  %215 = vmatpush.msra.mxu0 %v71
  %216 = vmatpush.msra.mxu0 %v68
  %217 = vmatpush.msra.mxu0 %v65
  %218 = vmatpush.msra.mxu0 %v62
  %219 = vmatpush.msra.mxu0 %v59
  %220 = vmatpush.msra.mxu0 %v56
  %221 = vmatpush.msra.mxu0 %v53
  %222 = vmatpush.msra.mxu0 %v50
  %223 = vmatpush.msra.mxu0 %v47
  %224 = vmatpush.msra.mxu0 %v44
  %225 = vmatpush.msra.mxu0 %v41
  %226 = vmatpush.msra.mxu0 %v38
  %227 = vmatpush.msra.mxu0 %v35
  %228 = vmatpush.msra.mxu0 %v32
  %229 = vmatpush.msra.mxu0 %v29
  %230 = vmatpush.msra.mxu0 %v26
  %231 = vmatmul.f32.gmra.mxu0 %v188
  %v232 = vpop.f32.mrf.mxu0
  %v233 = vadd.f32 0.0, %v232
  %234 = vdwg.mxu0
  %235 = vmatpush.msra.mxu0 %v72
  %236 = vmatpush.msra.mxu0 %v69
  %237 = vmatpush.msra.mxu0 %v66
  %238 = vmatpush.msra.mxu0 %v63
  %239 = vmatpush.msra.mxu0 %v60
  %240 = vmatpush.msra.mxu0 %v57
  %241 = vmatpush.msra.mxu0 %v54
  %242 = vmatpush.msra.mxu0 %v51
  %243 = vmatpush.msra.mxu0 %v48
  %244 = vmatpush.msra.mxu0 %v45
  %245 = vmatpush.msra.mxu0 %v42
  %246 = vmatpush.msra.mxu0 %v39
  %247 = vmatpush.msra.mxu0 %v36
  %248 = vmatpush.msra.mxu0 %v33
  %249 = vmatpush.msra.mxu0 %v30
  %250 = vmatpush.msra.mxu0 %v27
  %251 = vmatmul.f32.gmra.mxu0 %v188
  %v252 = vpop.f32.mrf.mxu0
  %v253 = vadd.f32 0.0, %v252
  %254 = vdwg.mxu0
  %v255 = vadd.f32 %v192, %v213
  %v256 = vxor.u32 %v255, 2147483648
  %v257 = vmul.f32 %v256, 1.442695
  %v258 = vpow.pop %v257
  %v259 = vadd.f32 %v258, 1.0
  %v260 = vrcp.pop %v259
  %v261 = vmul.f32 %v259, %v260
  %v262 = vsub.f32 1.0, %v261
  %v263 = vmul.f32 %v260, %v262
  %v264 = vadd.f32 %v260, %v263
  %vm265 = vweird.f32 %v259
  %vm266 = vweird.f32 %v260
  %vm267 = vmor %vm265, %vm266
  %v268 = vsel %vm267, %v260, %v264
  %v269 = vand.u32 2147483647, %v259
  %vm270 = vcmp.eq.f32.partialorder %v269, 8.507059e+37
  %v271 = vand.u32 %v259, 2147483648
  %v272 = vor.u32 1.1754944e-38, %v271
  %v273 = vsel %vm270, %v272, %v268
  %v274 = vmul.f32 1.0, %v273
  %v275 = vadd.f32 %v193, %v233
  %v276 = vxor.u32 %v275, 2147483648
  %v277 = vmul.f32 %v276, 1.442695
  %v278 = vpow.pop %v277
  %v279 = vadd.f32 %v278, 1.0
  %v280 = vrcp.pop %v279
  %v281 = vmul.f32 %v279, %v280
  %v282 = vsub.f32 1.0, %v281
  %v283 = vmul.f32 %v280, %v282
  %v284 = vadd.f32 %v280, %v283
  %vm285 = vweird.f32 %v279
  %vm286 = vweird.f32 %v280
  %vm287 = vmor %vm285, %vm286
  %v288 = vsel %vm287, %v280, %v284
  %v289 = vand.u32 2147483647, %v279
  %vm290 = vcmp.eq.f32.partialorder %v289, 8.507059e+37
  %v291 = vand.u32 %v279, 2147483648
  %v292 = vor.u32 1.1754944e-38, %v291
  %v293 = vsel %vm290, %v292, %v288
  %v294 = vmul.f32 1.0, %v293
  %v295 = vadd.f32 %v253, %v73
  %v296 = vmul.f32 %v274, %v295
  %v297 = vadd.f32 %v194, %v296
  %v298 = vtanh.pop %v297
  %v299 = vsub.f32 %v188, %v298
  %v300 = vmul.f32 %v294, %v299
  %v301 = vadd.f32 %v298, %v300
  %s302 = sadd.s32 %s74, 1
  %v303 = vstv %s302
  %vm304 = vcmp.gt.s32.totalorder %v24, %v303
  %v305 = vsel %vm304, %v301, %v188
  %v306 = vsel %vm304, %v301, 0.0
  %s307 = scalar_lea.vmem %s4, 8
  %308 = vst [vmem:[%s307] sm:$0xff] %v306
  %s309 = scalar_lea.vmem %s1, 48
  %v310 = vld [vmem:[%s309] sm:$0xff]
  %v311 = vld [vmem:[%s309 + $0x8] sm:$0xff]
  %v312 = vld [vmem:[%s309 + $0x10] sm:$0xff]
  %313 = vmatpush.msra.mxu0 %v70
  %314 = vmatpush.msra.mxu0 %v67
  %315 = vmatpush.msra.mxu0 %v64
  %316 = vmatpush.msra.mxu0 %v61
  %317 = vmatpush.msra.mxu0 %v58
  %318 = vmatpush.msra.mxu0 %v55
  %319 = vmatpush.msra.mxu0 %v52
  %320 = vmatpush.msra.mxu0 %v49
  %321 = vmatpush.msra.mxu0 %v46
  %322 = vmatpush.msra.mxu0 %v43
  %323 = vmatpush.msra.mxu0 %v40
  %324 = vmatpush.msra.mxu0 %v37
  %325 = vmatpush.msra.mxu0 %v34
  %326 = vmatpush.msra.mxu0 %v31
  %327 = vmatpush.msra.mxu0 %v28
  %328 = vmatpush.msra.mxu0 %v25
  %329 = vmatmul.f32.gmra.mxu0 %v305
  %v330 = vpop.f32.mrf.mxu0
  %v331 = vadd.f32 0.0, %v330
  %332 = vdwg.mxu0
  %333 = vmatpush.msra.mxu0 %v71
  %334 = vmatpush.msra.mxu0 %v68
  %335 = vmatpush.msra.mxu0 %v65
  %336 = vmatpush.msra.mxu0 %v62
  %337 = vmatpush.msra.mxu0 %v59
  %338 = vmatpush.msra.mxu0 %v56
  %339 = vmatpush.msra.mxu0 %v53
  %340 = vmatpush.msra.mxu0 %v50
  %341 = vmatpush.msra.mxu0 %v47
  %342 = vmatpush.msra.mxu0 %v44
  %343 = vmatpush.msra.mxu0 %v41
  %344 = vmatpush.msra.mxu0 %v38
  %345 = vmatpush.msra.mxu0 %v35
  %346 = vmatpush.msra.mxu0 %v32
  %347 = vmatpush.msra.mxu0 %v29
  %348 = vmatpush.msra.mxu0 %v26
  %349 = vmatmul.f32.gmra.mxu0 %v305
  %v350 = vpop.f32.mrf.mxu0
  %v351 = vadd.f32 0.0, %v350
  %352 = vdwg.mxu0
  %353 = vmatpush.msra.mxu0 %v72
  %354 = vmatpush.msra.mxu0 %v69
  %355 = vmatpush.msra.mxu0 %v66
  %356 = vmatpush.msra.mxu0 %v63
  %357 = vmatpush.msra.mxu0 %v60
  %358 = vmatpush.msra.mxu0 %v57
  %359 = vmatpush.msra.mxu0 %v54
  %360 = vmatpush.msra.mxu0 %v51
  %361 = vmatpush.msra.mxu0 %v48
  %362 = vmatpush.msra.mxu0 %v45
  %363 = vmatpush.msra.mxu0 %v42
  %364 = vmatpush.msra.mxu0 %v39
  %365 = vmatpush.msra.mxu0 %v36
  %366 = vmatpush.msra.mxu0 %v33
  %367 = vmatpush.msra.mxu0 %v30
  %368 = vmatpush.msra.mxu0 %v27
  %369 = vmatmul.f32.gmra.mxu0 %v305
  %v370 = vpop.f32.mrf.mxu0
  %v371 = vadd.f32 0.0, %v370
  %372 = vdwg.mxu0
  %v373 = vadd.f32 %v310, %v331
  %v374 = vxor.u32 %v373, 2147483648
  %v375 = vmul.f32 %v374, 1.442695
  %v376 = vpow.pop %v375
  %v377 = vadd.f32 %v376, 1.0
  %v378 = vrcp.pop %v377
  %v379 = vmul.f32 %v377, %v378
  %v380 = vsub.f32 1.0, %v379
  %v381 = vmul.f32 %v378, %v380
  %v382 = vadd.f32 %v378, %v381
  %vm383 = vweird.f32 %v377
  %vm384 = vweird.f32 %v378
  %vm385 = vmor %vm383, %vm384
  %v386 = vsel %vm385, %v378, %v382
  %v387 = vand.u32 2147483647, %v377
  %vm388 = vcmp.eq.f32.partialorder %v387, 8.507059e+37
  %v389 = vand.u32 %v377, 2147483648
  %v390 = vor.u32 1.1754944e-38, %v389
  %v391 = vsel %vm388, %v390, %v386
  %v392 = vmul.f32 1.0, %v391
  %v393 = vadd.f32 %v311, %v351
  %v394 = vxor.u32 %v393, 2147483648
  %v395 = vmul.f32 %v394, 1.442695
  %v396 = vpow.pop %v395
  %v397 = vadd.f32 %v396, 1.0
  %v398 = vrcp.pop %v397
  %v399 = vmul.f32 %v397, %v398
  %v400 = vsub.f32 1.0, %v399
  %v401 = vmul.f32 %v398, %v400
  %v402 = vadd.f32 %v398, %v401
  %vm403 = vweird.f32 %v397
  %vm404 = vweird.f32 %v398
  %vm405 = vmor %vm403, %vm404
  %v406 = vsel %vm405, %v398, %v402
  %v407 = vand.u32 2147483647, %v397
  %vm408 = vcmp.eq.f32.partialorder %v407, 8.507059e+37
  %v409 = vand.u32 %v397, 2147483648
  %v410 = vor.u32 1.1754944e-38, %v409
  %v411 = vsel %vm408, %v410, %v406
  %v412 = vmul.f32 1.0, %v411
  %v413 = vadd.f32 %v371, %v73
  %v414 = vmul.f32 %v392, %v413
  %v415 = vadd.f32 %v312, %v414
  %v416 = vtanh.pop %v415
  %v417 = vsub.f32 %v305, %v416
  %v418 = vmul.f32 %v412, %v417
  %v419 = vadd.f32 %v416, %v418
  %s420 = sadd.s32 %s74, 2
  %v421 = vstv %s420
  %vm422 = vcmp.gt.s32.totalorder %v24, %v421
  %v423 = vsel %vm422, %v419, %v305
  %v424 = vsel %vm422, %v419, 0.0
  %s425 = scalar_lea.vmem %s4, 16
  %426 = vst [vmem:[%s425] sm:$0xff] %v424
  %s427 = scalar_lea.vmem %s1, 72
  %v428 = vld [vmem:[%s427] sm:$0xff]
  %v429 = vld [vmem:[%s427 + $0x8] sm:$0xff]
  %v430 = vld [vmem:[%s427 + $0x10] sm:$0xff]
  %431 = vmatpush.msra.mxu0 %v70
  %432 = vmatpush.msra.mxu0 %v67
  %433 = vmatpush.msra.mxu0 %v64
  %434 = vmatpush.msra.mxu0 %v61
  %435 = vmatpush.msra.mxu0 %v58
  %436 = vmatpush.msra.mxu0 %v55
  %437 = vmatpush.msra.mxu0 %v52
  %438 = vmatpush.msra.mxu0 %v49
  %439 = vmatpush.msra.mxu0 %v46
  %440 = vmatpush.msra.mxu0 %v43
  %441 = vmatpush.msra.mxu0 %v40
  %442 = vmatpush.msra.mxu0 %v37
  %443 = vmatpush.msra.mxu0 %v34
  %444 = vmatpush.msra.mxu0 %v31
  %445 = vmatpush.msra.mxu0 %v28
  %446 = vmatpush.msra.mxu0 %v25
  %447 = vmatmul.f32.gmra.mxu0 %v423
  %v448 = vpop.f32.mrf.mxu0
  %v449 = vadd.f32 0.0, %v448
  %450 = vdwg.mxu0
  %451 = vmatpush.msra.mxu0 %v71
  %452 = vmatpush.msra.mxu0 %v68
  %453 = vmatpush.msra.mxu0 %v65
  %454 = vmatpush.msra.mxu0 %v62
  %455 = vmatpush.msra.mxu0 %v59
  %456 = vmatpush.msra.mxu0 %v56
  %457 = vmatpush.msra.mxu0 %v53
  %458 = vmatpush.msra.mxu0 %v50
  %459 = vmatpush.msra.mxu0 %v47
  %460 = vmatpush.msra.mxu0 %v44
  %461 = vmatpush.msra.mxu0 %v41
  %462 = vmatpush.msra.mxu0 %v38
  %463 = vmatpush.msra.mxu0 %v35
  %464 = vmatpush.msra.mxu0 %v32
  %465 = vmatpush.msra.mxu0 %v29
  %466 = vmatpush.msra.mxu0 %v26
  %467 = vmatmul.f32.gmra.mxu0 %v423
  %v468 = vpop.f32.mrf.mxu0
  %v469 = vadd.f32 0.0, %v468
  %470 = vdwg.mxu0
  %471 = vmatpush.msra.mxu0 %v72
  %472 = vmatpush.msra.mxu0 %v69
  %473 = vmatpush.msra.mxu0 %v66
  %474 = vmatpush.msra.mxu0 %v63
  %475 = vmatpush.msra.mxu0 %v60
  %476 = vmatpush.msra.mxu0 %v57
  %477 = vmatpush.msra.mxu0 %v54
  %478 = vmatpush.msra.mxu0 %v51
  %479 = vmatpush.msra.mxu0 %v48
  %480 = vmatpush.msra.mxu0 %v45
  %481 = vmatpush.msra.mxu0 %v42
  %482 = vmatpush.msra.mxu0 %v39
  %483 = vmatpush.msra.mxu0 %v36
  %484 = vmatpush.msra.mxu0 %v33
  %485 = vmatpush.msra.mxu0 %v30
  %486 = vmatpush.msra.mxu0 %v27
  %487 = vmatmul.f32.gmra.mxu0 %v423
  %v488 = vpop.f32.mrf.mxu0
  %v489 = vadd.f32 0.0, %v488
  %490 = vdwg.mxu0
  %v491 = vadd.f32 %v428, %v449
  %v492 = vxor.u32 %v491, 2147483648
  %v493 = vmul.f32 %v492, 1.442695
  %v494 = vpow.pop %v493
  %v495 = vadd.f32 %v494, 1.0
  %v496 = vrcp.pop %v495
  %v497 = vmul.f32 %v495, %v496
  %v498 = vsub.f32 1.0, %v497
  %v499 = vmul.f32 %v496, %v498
  %v500 = vadd.f32 %v496, %v499
  %vm501 = vweird.f32 %v495
  %vm502 = vweird.f32 %v496
  %vm503 = vmor %vm501, %vm502
  %v504 = vsel %vm503, %v496, %v500
  %v505 = vand.u32 2147483647, %v495
  %vm506 = vcmp.eq.f32.partialorder %v505, 8.507059e+37
  %v507 = vand.u32 %v495, 2147483648
  %v508 = vor.u32 1.1754944e-38, %v507
  %v509 = vsel %vm506, %v508, %v504
  %v510 = vmul.f32 1.0, %v509
  %v511 = vadd.f32 %v429, %v469
  %v512 = vxor.u32 %v511, 2147483648
  %v513 = vmul.f32 %v512, 1.442695
  %v514 = vpow.pop %v513
  %v515 = vadd.f32 %v514, 1.0
  %v516 = vrcp.pop %v515
  %v517 = vmul.f32 %v515, %v516
  %v518 = vsub.f32 1.0, %v517
  %v519 = vmul.f32 %v516, %v518
  %v520 = vadd.f32 %v516, %v519
  %vm521 = vweird.f32 %v515
  %vm522 = vweird.f32 %v516
  %vm523 = vmor %vm521, %vm522
  %v524 = vsel %vm523, %v516, %v520
  %v525 = vand.u32 2147483647, %v515
  %vm526 = vcmp.eq.f32.partialorder %v525, 8.507059e+37
  %v527 = vand.u32 %v515, 2147483648
  %v528 = vor.u32 1.1754944e-38, %v527
  %v529 = vsel %vm526, %v528, %v524
  %v530 = vmul.f32 1.0, %v529
  %v531 = vadd.f32 %v489, %v73
  %v532 = vmul.f32 %v510, %v531
  %v533 = vadd.f32 %v430, %v532
  %v534 = vtanh.pop %v533
  %v535 = vsub.f32 %v423, %v534
  %v536 = vmul.f32 %v530, %v535
  %v537 = vadd.f32 %v534, %v536
  %s538 = sadd.s32 %s74, 3
  %v539 = vstv %s538
  %vm540 = vcmp.gt.s32.totalorder %v24, %v539
  %v541 = vsel %vm540, %v537, %v423
  %v542 = vsel %vm540, %v537, 0.0
  %s543 = scalar_lea.vmem %s4, 24
  %544 = vst [vmem:[%s543] sm:$0xff] %v542
  %s545 = scalar_lea.vmem %s1, 96
  %v546 = vld [vmem:[%s545] sm:$0xff]
  %v547 = vld [vmem:[%s545 + $0x8] sm:$0xff]
  %v548 = vld [vmem:[%s545 + $0x10] sm:$0xff]
  %549 = vmatpush.msra.mxu0 %v70
  %550 = vmatpush.msra.mxu0 %v67
  %551 = vmatpush.msra.mxu0 %v64
  %552 = vmatpush.msra.mxu0 %v61
  %553 = vmatpush.msra.mxu0 %v58
  %554 = vmatpush.msra.mxu0 %v55
  %555 = vmatpush.msra.mxu0 %v52
  %556 = vmatpush.msra.mxu0 %v49
  %557 = vmatpush.msra.mxu0 %v46
  %558 = vmatpush.msra.mxu0 %v43
  %559 = vmatpush.msra.mxu0 %v40
  %560 = vmatpush.msra.mxu0 %v37
  %561 = vmatpush.msra.mxu0 %v34
  %562 = vmatpush.msra.mxu0 %v31
  %563 = vmatpush.msra.mxu0 %v28
  %564 = vmatpush.msra.mxu0 %v25
  %565 = vmatmul.f32.gmra.mxu0 %v541
  %v566 = vpop.f32.mrf.mxu0
  %v567 = vadd.f32 0.0, %v566
  %568 = vdwg.mxu0
  %569 = vmatpush.msra.mxu0 %v71
  %570 = vmatpush.msra.mxu0 %v68
  %571 = vmatpush.msra.mxu0 %v65
  %572 = vmatpush.msra.mxu0 %v62
  %573 = vmatpush.msra.mxu0 %v59
  %574 = vmatpush.msra.mxu0 %v56
  %575 = vmatpush.msra.mxu0 %v53
  %576 = vmatpush.msra.mxu0 %v50
  %577 = vmatpush.msra.mxu0 %v47
  %578 = vmatpush.msra.mxu0 %v44
  %579 = vmatpush.msra.mxu0 %v41
  %580 = vmatpush.msra.mxu0 %v38
  %581 = vmatpush.msra.mxu0 %v35
  %582 = vmatpush.msra.mxu0 %v32
  %583 = vmatpush.msra.mxu0 %v29
  %584 = vmatpush.msra.mxu0 %v26
  %585 = vmatmul.f32.gmra.mxu0 %v541
  %v586 = vpop.f32.mrf.mxu0
  %v587 = vadd.f32 0.0, %v586
  %588 = vdwg.mxu0
  %589 = vmatpush.msra.mxu0 %v72
  %590 = vmatpush.msra.mxu0 %v69
  %591 = vmatpush.msra.mxu0 %v66
  %592 = vmatpush.msra.mxu0 %v63
  %593 = vmatpush.msra.mxu0 %v60
  %594 = vmatpush.msra.mxu0 %v57
  %595 = vmatpush.msra.mxu0 %v54
  %596 = vmatpush.msra.mxu0 %v51
  %597 = vmatpush.msra.mxu0 %v48
  %598 = vmatpush.msra.mxu0 %v45
  %599 = vmatpush.msra.mxu0 %v42
  %600 = vmatpush.msra.mxu0 %v39
  %601 = vmatpush.msra.mxu0 %v36
  %602 = vmatpush.msra.mxu0 %v33
  %603 = vmatpush.msra.mxu0 %v30
  %604 = vmatpush.msra.mxu0 %v27
  %605 = vmatmul.f32.gmra.mxu0 %v541
  %v606 = vpop.f32.mrf.mxu0
  %v607 = vadd.f32 0.0, %v606
  %608 = vdwg.mxu0
  %v609 = vadd.f32 %v546, %v567
  %v610 = vxor.u32 %v609, 2147483648
  %v611 = vmul.f32 %v610, 1.442695
  %v612 = vpow.pop %v611
  %v613 = vadd.f32 %v612, 1.0
  %v614 = vrcp.pop %v613
  %v615 = vmul.f32 %v613, %v614
  %v616 = vsub.f32 1.0, %v615
  %v617 = vmul.f32 %v614, %v616
  %v618 = vadd.f32 %v614, %v617
  %vm619 = vweird.f32 %v613
  %vm620 = vweird.f32 %v614
  %vm621 = vmor %vm619, %vm620
  %v622 = vsel %vm621, %v614, %v618
  %v623 = vand.u32 2147483647, %v613
  %vm624 = vcmp.eq.f32.partialorder %v623, 8.507059e+37
  %v625 = vand.u32 %v613, 2147483648
  %v626 = vor.u32 1.1754944e-38, %v625
  %v627 = vsel %vm624, %v626, %v622
  %v628 = vmul.f32 1.0, %v627
  %v629 = vadd.f32 %v547, %v587
  %v630 = vxor.u32 %v629, 2147483648
  %v631 = vmul.f32 %v630, 1.442695
  %v632 = vpow.pop %v631
  %v633 = vadd.f32 %v632, 1.0
  %v634 = vrcp.pop %v633
  %v635 = vmul.f32 %v633, %v634
  %v636 = vsub.f32 1.0, %v635
  %v637 = vmul.f32 %v634, %v636
  %v638 = vadd.f32 %v634, %v637
  %vm639 = vweird.f32 %v633
  %vm640 = vweird.f32 %v634
  %vm641 = vmor %vm639, %vm640
  %v642 = vsel %vm641, %v634, %v638
  %v643 = vand.u32 2147483647, %v633
  %vm644 = vcmp.eq.f32.partialorder %v643, 8.507059e+37
  %v645 = vand.u32 %v633, 2147483648
  %v646 = vor.u32 1.1754944e-38, %v645
  %v647 = vsel %vm644, %v646, %v642
  %v648 = vmul.f32 1.0, %v647
  %v649 = vadd.f32 %v607, %v73
  %v650 = vmul.f32 %v628, %v649
  %v651 = vadd.f32 %v548, %v650
  %v652 = vtanh.pop %v651
  %v653 = vsub.f32 %v541, %v652
  %v654 = vmul.f32 %v648, %v653
  %v655 = vadd.f32 %v652, %v654
  %s656 = sadd.s32 %s74, 4
  %v657 = vstv %s656
  %vm658 = vcmp.gt.s32.totalorder %v24, %v657
  %v659 = vsel %vm658, %v655, %v541
  %v660 = vsel %vm658, %v655, 0.0
  %s661 = scalar_lea.vmem %s4, 32
  %662 = vst [vmem:[%s661] sm:$0xff] %v660
  %s663 = scalar_lea.vmem %s1, 120
  %v664 = vld [vmem:[%s663] sm:$0xff]
  %v665 = vld [vmem:[%s663 + $0x8] sm:$0xff]
  %v666 = vld [vmem:[%s663 + $0x10] sm:$0xff]
  %667 = vmatpush.msra.mxu0 %v70
  %668 = vmatpush.msra.mxu0 %v67
  %669 = vmatpush.msra.mxu0 %v64
  %670 = vmatpush.msra.mxu0 %v61
  %671 = vmatpush.msra.mxu0 %v58
  %672 = vmatpush.msra.mxu0 %v55
  %673 = vmatpush.msra.mxu0 %v52
  %674 = vmatpush.msra.mxu0 %v49
  %675 = vmatpush.msra.mxu0 %v46
  %676 = vmatpush.msra.mxu0 %v43
  %677 = vmatpush.msra.mxu0 %v40
  %678 = vmatpush.msra.mxu0 %v37
  %679 = vmatpush.msra.mxu0 %v34
  %680 = vmatpush.msra.mxu0 %v31
  %681 = vmatpush.msra.mxu0 %v28
  %682 = vmatpush.msra.mxu0 %v25
  %683 = vmatmul.f32.gmra.mxu0 %v659
  %v684 = vpop.f32.mrf.mxu0
  %v685 = vadd.f32 0.0, %v684
  %686 = vdwg.mxu0
  %687 = vmatpush.msra.mxu0 %v71
  %688 = vmatpush.msra.mxu0 %v68
  %689 = vmatpush.msra.mxu0 %v65
  %690 = vmatpush.msra.mxu0 %v62
  %691 = vmatpush.msra.mxu0 %v59
  %692 = vmatpush.msra.mxu0 %v56
  %693 = vmatpush.msra.mxu0 %v53
  %694 = vmatpush.msra.mxu0 %v50
  %695 = vmatpush.msra.mxu0 %v47
  %696 = vmatpush.msra.mxu0 %v44
  %697 = vmatpush.msra.mxu0 %v41
  %698 = vmatpush.msra.mxu0 %v38
  %699 = vmatpush.msra.mxu0 %v35
  %700 = vmatpush.msra.mxu0 %v32
  %701 = vmatpush.msra.mxu0 %v29
  %702 = vmatpush.msra.mxu0 %v26
  %703 = vmatmul.f32.gmra.mxu0 %v659
  %v704 = vpop.f32.mrf.mxu0
  %v705 = vadd.f32 0.0, %v704
  %706 = vdwg.mxu0
  %707 = vmatpush.msra.mxu0 %v72
  %708 = vmatpush.msra.mxu0 %v69
  %709 = vmatpush.msra.mxu0 %v66
  %710 = vmatpush.msra.mxu0 %v63
  %711 = vmatpush.msra.mxu0 %v60
  %712 = vmatpush.msra.mxu0 %v57
  %713 = vmatpush.msra.mxu0 %v54
  %714 = vmatpush.msra.mxu0 %v51
  %715 = vmatpush.msra.mxu0 %v48
  %716 = vmatpush.msra.mxu0 %v45
  %717 = vmatpush.msra.mxu0 %v42
  %718 = vmatpush.msra.mxu0 %v39
  %719 = vmatpush.msra.mxu0 %v36
  %720 = vmatpush.msra.mxu0 %v33
  %721 = vmatpush.msra.mxu0 %v30
  %722 = vmatpush.msra.mxu0 %v27
  %723 = vmatmul.f32.gmra.mxu0 %v659
  %v724 = vpop.f32.mrf.mxu0
  %v725 = vadd.f32 0.0, %v724
  %726 = vdwg.mxu0
  %v727 = vadd.f32 %v664, %v685
  %v728 = vxor.u32 %v727, 2147483648
  %v729 = vmul.f32 %v728, 1.442695
  %v730 = vpow.pop %v729
  %v731 = vadd.f32 %v730, 1.0
  %v732 = vrcp.pop %v731
  %v733 = vmul.f32 %v731, %v732
  %v734 = vsub.f32 1.0, %v733
  %v735 = vmul.f32 %v732, %v734
  %v736 = vadd.f32 %v732, %v735
  %vm737 = vweird.f32 %v731
  %vm738 = vweird.f32 %v732
  %vm739 = vmor %vm737, %vm738
  %v740 = vsel %vm739, %v732, %v736
  %v741 = vand.u32 2147483647, %v731
  %vm742 = vcmp.eq.f32.partialorder %v741, 8.507059e+37
  %v743 = vand.u32 %v731, 2147483648
  %v744 = vor.u32 1.1754944e-38, %v743
  %v745 = vsel %vm742, %v744, %v740
  %v746 = vmul.f32 1.0, %v745
  %v747 = vadd.f32 %v665, %v705
  %v748 = vxor.u32 %v747, 2147483648
  %v749 = vmul.f32 %v748, 1.442695
  %v750 = vpow.pop %v749
  %v751 = vadd.f32 %v750, 1.0
  %v752 = vrcp.pop %v751
  %v753 = vmul.f32 %v751, %v752
  %v754 = vsub.f32 1.0, %v753
  %v755 = vmul.f32 %v752, %v754
  %v756 = vadd.f32 %v752, %v755
  %vm757 = vweird.f32 %v751
  %vm758 = vweird.f32 %v752
  %vm759 = vmor %vm757, %vm758
  %v760 = vsel %vm759, %v752, %v756
  %v761 = vand.u32 2147483647, %v751
  %vm762 = vcmp.eq.f32.partialorder %v761, 8.507059e+37
  %v763 = vand.u32 %v751, 2147483648
  %v764 = vor.u32 1.1754944e-38, %v763
  %v765 = vsel %vm762, %v764, %v760
  %v766 = vmul.f32 1.0, %v765
  %v767 = vadd.f32 %v725, %v73
  %v768 = vmul.f32 %v746, %v767
  %v769 = vadd.f32 %v666, %v768
  %v770 = vtanh.pop %v769
  %v771 = vsub.f32 %v659, %v770
  %v772 = vmul.f32 %v766, %v771
  %v773 = vadd.f32 %v770, %v772
  %s774 = sadd.s32 %s74, 5
  %v775 = vstv %s774
  %vm776 = vcmp.gt.s32.totalorder %v24, %v775
  %v777 = vsel %vm776, %v773, %v659
  %v778 = vsel %vm776, %v773, 0.0
  %s779 = scalar_lea.vmem %s4, 40
  %780 = vst [vmem:[%s779] sm:$0xff] %v778
  %s781 = scalar_lea.vmem %s1, 144
  %v782 = vld [vmem:[%s781] sm:$0xff]
  %v783 = vld [vmem:[%s781 + $0x8] sm:$0xff]
  %v784 = vld [vmem:[%s781 + $0x10] sm:$0xff]
  %785 = vmatpush.msra.mxu0 %v70
  %786 = vmatpush.msra.mxu0 %v67
  %787 = vmatpush.msra.mxu0 %v64
  %788 = vmatpush.msra.mxu0 %v61
  %789 = vmatpush.msra.mxu0 %v58
  %790 = vmatpush.msra.mxu0 %v55
  %791 = vmatpush.msra.mxu0 %v52
  %792 = vmatpush.msra.mxu0 %v49
  %793 = vmatpush.msra.mxu0 %v46
  %794 = vmatpush.msra.mxu0 %v43
  %795 = vmatpush.msra.mxu0 %v40
  %796 = vmatpush.msra.mxu0 %v37
  %797 = vmatpush.msra.mxu0 %v34
  %798 = vmatpush.msra.mxu0 %v31
  %799 = vmatpush.msra.mxu0 %v28
  %800 = vmatpush.msra.mxu0 %v25
  %801 = vmatmul.f32.gmra.mxu0 %v777
  %v802 = vpop.f32.mrf.mxu0
  %v803 = vadd.f32 0.0, %v802
  %804 = vdwg.mxu0
  %805 = vmatpush.msra.mxu0 %v71
  %806 = vmatpush.msra.mxu0 %v68
  %807 = vmatpush.msra.mxu0 %v65
  %808 = vmatpush.msra.mxu0 %v62
  %809 = vmatpush.msra.mxu0 %v59
  %810 = vmatpush.msra.mxu0 %v56
  %811 = vmatpush.msra.mxu0 %v53
  %812 = vmatpush.msra.mxu0 %v50
  %813 = vmatpush.msra.mxu0 %v47
  %814 = vmatpush.msra.mxu0 %v44
  %815 = vmatpush.msra.mxu0 %v41
  %816 = vmatpush.msra.mxu0 %v38
  %817 = vmatpush.msra.mxu0 %v35
  %818 = vmatpush.msra.mxu0 %v32
  %819 = vmatpush.msra.mxu0 %v29
  %820 = vmatpush.msra.mxu0 %v26
  %821 = vmatmul.f32.gmra.mxu0 %v777
  %v822 = vpop.f32.mrf.mxu0
  %v823 = vadd.f32 0.0, %v822
  %824 = vdwg.mxu0
  %825 = vmatpush.msra.mxu0 %v72
  %826 = vmatpush.msra.mxu0 %v69
  %827 = vmatpush.msra.mxu0 %v66
  %828 = vmatpush.msra.mxu0 %v63
  %829 = vmatpush.msra.mxu0 %v60
  %830 = vmatpush.msra.mxu0 %v57
  %831 = vmatpush.msra.mxu0 %v54
  %832 = vmatpush.msra.mxu0 %v51
  %833 = vmatpush.msra.mxu0 %v48
  %834 = vmatpush.msra.mxu0 %v45
  %835 = vmatpush.msra.mxu0 %v42
  %836 = vmatpush.msra.mxu0 %v39
  %837 = vmatpush.msra.mxu0 %v36
  %838 = vmatpush.msra.mxu0 %v33
  %839 = vmatpush.msra.mxu0 %v30
  %840 = vmatpush.msra.mxu0 %v27
  %841 = vmatmul.f32.gmra.mxu0 %v777
  %v842 = vpop.f32.mrf.mxu0
  %v843 = vadd.f32 0.0, %v842
  %844 = vdwg.mxu0
  %v845 = vadd.f32 %v782, %v803
  %v846 = vxor.u32 %v845, 2147483648
  %v847 = vmul.f32 %v846, 1.442695
  %v848 = vpow.pop %v847
  %v849 = vadd.f32 %v848, 1.0
  %v850 = vrcp.pop %v849
  %v851 = vmul.f32 %v849, %v850
  %v852 = vsub.f32 1.0, %v851
  %v853 = vmul.f32 %v850, %v852
  %v854 = vadd.f32 %v850, %v853
  %vm855 = vweird.f32 %v849
  %vm856 = vweird.f32 %v850
  %vm857 = vmor %vm855, %vm856
  %v858 = vsel %vm857, %v850, %v854
  %v859 = vand.u32 2147483647, %v849
  %vm860 = vcmp.eq.f32.partialorder %v859, 8.507059e+37
  %v861 = vand.u32 %v849, 2147483648
  %v862 = vor.u32 1.1754944e-38, %v861
  %v863 = vsel %vm860, %v862, %v858
  %v864 = vmul.f32 1.0, %v863
  %v865 = vadd.f32 %v783, %v823
  %v866 = vxor.u32 %v865, 2147483648
  %v867 = vmul.f32 %v866, 1.442695
  %v868 = vpow.pop %v867
  %v869 = vadd.f32 %v868, 1.0
  %v870 = vrcp.pop %v869
  %v871 = vmul.f32 %v869, %v870
  %v872 = vsub.f32 1.0, %v871
  %v873 = vmul.f32 %v870, %v872
  %v874 = vadd.f32 %v870, %v873
  %vm875 = vweird.f32 %v869
  %vm876 = vweird.f32 %v870
  %vm877 = vmor %vm875, %vm876
  %v878 = vsel %vm877, %v870, %v874
  %v879 = vand.u32 2147483647, %v869
  %vm880 = vcmp.eq.f32.partialorder %v879, 8.507059e+37
  %v881 = vand.u32 %v869, 2147483648
  %v882 = vor.u32 1.1754944e-38, %v881
  %v883 = vsel %vm880, %v882, %v878
  %v884 = vmul.f32 1.0, %v883
  %v885 = vadd.f32 %v843, %v73
  %v886 = vmul.f32 %v864, %v885
  %v887 = vadd.f32 %v784, %v886
  %v888 = vtanh.pop %v887
  %v889 = vsub.f32 %v777, %v888
  %v890 = vmul.f32 %v884, %v889
  %v891 = vadd.f32 %v888, %v890
  %s892 = sadd.s32 %s74, 6
  %v893 = vstv %s892
  %vm894 = vcmp.gt.s32.totalorder %v24, %v893
  %v895 = vsel %vm894, %v891, %v777
  %v896 = vsel %vm894, %v891, 0.0
  %s897 = scalar_lea.vmem %s4, 48
  %898 = vst [vmem:[%s897] sm:$0xff] %v896
  %s899 = scalar_lea.vmem %s1, 168
  %v900 = vld [vmem:[%s899] sm:$0xff]
  %v901 = vld [vmem:[%s899 + $0x8] sm:$0xff]
  %v902 = vld [vmem:[%s899 + $0x10] sm:$0xff]
  %903 = vmatpush.msra.mxu0 %v70
  %904 = vmatpush.msra.mxu0 %v67
  %905 = vmatpush.msra.mxu0 %v64
  %906 = vmatpush.msra.mxu0 %v61
  %907 = vmatpush.msra.mxu0 %v58
  %908 = vmatpush.msra.mxu0 %v55
  %909 = vmatpush.msra.mxu0 %v52
  %910 = vmatpush.msra.mxu0 %v49
  %911 = vmatpush.msra.mxu0 %v46
  %912 = vmatpush.msra.mxu0 %v43
  %913 = vmatpush.msra.mxu0 %v40
  %914 = vmatpush.msra.mxu0 %v37
  %915 = vmatpush.msra.mxu0 %v34
  %916 = vmatpush.msra.mxu0 %v31
  %917 = vmatpush.msra.mxu0 %v28
  %918 = vmatpush.msra.mxu0 %v25
  %919 = vmatmul.f32.gmra.mxu0 %v895
  %v920 = vpop.f32.mrf.mxu0
  %v921 = vadd.f32 0.0, %v920
  %922 = vdwg.mxu0
  %923 = vmatpush.msra.mxu0 %v71
  %924 = vmatpush.msra.mxu0 %v68
  %925 = vmatpush.msra.mxu0 %v65
  %926 = vmatpush.msra.mxu0 %v62
  %927 = vmatpush.msra.mxu0 %v59
  %928 = vmatpush.msra.mxu0 %v56
  %929 = vmatpush.msra.mxu0 %v53
  %930 = vmatpush.msra.mxu0 %v50
  %931 = vmatpush.msra.mxu0 %v47
  %932 = vmatpush.msra.mxu0 %v44
  %933 = vmatpush.msra.mxu0 %v41
  %934 = vmatpush.msra.mxu0 %v38
  %935 = vmatpush.msra.mxu0 %v35
  %936 = vmatpush.msra.mxu0 %v32
  %937 = vmatpush.msra.mxu0 %v29
  %938 = vmatpush.msra.mxu0 %v26
  %939 = vmatmul.f32.gmra.mxu0 %v895
  %v940 = vpop.f32.mrf.mxu0
  %v941 = vadd.f32 0.0, %v940
  %942 = vdwg.mxu0
  %943 = vmatpush.msra.mxu0 %v72
  %944 = vmatpush.msra.mxu0 %v69
  %945 = vmatpush.msra.mxu0 %v66
  %946 = vmatpush.msra.mxu0 %v63
  %947 = vmatpush.msra.mxu0 %v60
  %948 = vmatpush.msra.mxu0 %v57
  %949 = vmatpush.msra.mxu0 %v54
  %950 = vmatpush.msra.mxu0 %v51
  %951 = vmatpush.msra.mxu0 %v48
  %952 = vmatpush.msra.mxu0 %v45
  %953 = vmatpush.msra.mxu0 %v42
  %954 = vmatpush.msra.mxu0 %v39
  %955 = vmatpush.msra.mxu0 %v36
  %956 = vmatpush.msra.mxu0 %v33
  %957 = vmatpush.msra.mxu0 %v30
  %958 = vmatpush.msra.mxu0 %v27
  %959 = vmatmul.f32.gmra.mxu0 %v895
  %v960 = vpop.f32.mrf.mxu0
  %v961 = vadd.f32 0.0, %v960
  %962 = vdwg.mxu0
  %v963 = vadd.f32 %v900, %v921
  %v964 = vxor.u32 %v963, 2147483648
  %v965 = vmul.f32 %v964, 1.442695
  %v966 = vpow.pop %v965
  %v967 = vadd.f32 %v966, 1.0
  %v968 = vrcp.pop %v967
  %v969 = vmul.f32 %v967, %v968
  %v970 = vsub.f32 1.0, %v969
  %v971 = vmul.f32 %v968, %v970
  %v972 = vadd.f32 %v968, %v971
  %vm973 = vweird.f32 %v967
  %vm974 = vweird.f32 %v968
  %vm975 = vmor %vm973, %vm974
  %v976 = vsel %vm975, %v968, %v972
  %v977 = vand.u32 2147483647, %v967
  %vm978 = vcmp.eq.f32.partialorder %v977, 8.507059e+37
  %v979 = vand.u32 %v967, 2147483648
  %v980 = vor.u32 1.1754944e-38, %v979
  %v981 = vsel %vm978, %v980, %v976
  %v982 = vmul.f32 1.0, %v981
  %v983 = vadd.f32 %v901, %v941
  %v984 = vxor.u32 %v983, 2147483648
  %v985 = vmul.f32 %v984, 1.442695
  %v986 = vpow.pop %v985
  %v987 = vadd.f32 %v986, 1.0
  %v988 = vrcp.pop %v987
  %v989 = vmul.f32 %v987, %v988
  %v990 = vsub.f32 1.0, %v989
  %v991 = vmul.f32 %v988, %v990
  %v992 = vadd.f32 %v988, %v991
  %vm993 = vweird.f32 %v987
  %vm994 = vweird.f32 %v988
  %vm995 = vmor %vm993, %vm994
  %v996 = vsel %vm995, %v988, %v992
  %v997 = vand.u32 2147483647, %v987
  %vm998 = vcmp.eq.f32.partialorder %v997, 8.507059e+37
  %v999 = vand.u32 %v987, 2147483648
  %v1000 = vor.u32 1.1754944e-38, %v999
  %v1001 = vsel %vm998, %v1000, %v996
  %v1002 = vmul.f32 1.0, %v1001
  %v1003 = vadd.f32 %v961, %v73
  %v1004 = vmul.f32 %v982, %v1003
  %v1005 = vadd.f32 %v902, %v1004
  %v1006 = vtanh.pop %v1005
  %v1007 = vsub.f32 %v895, %v1006
  %v1008 = vmul.f32 %v1002, %v1007
  %v1009 = vadd.f32 %v1006, %v1008
  %s1010 = sadd.s32 %s74, 7
  %v1011 = vstv %s1010
  %vm1012 = vcmp.gt.s32.totalorder %v24, %v1011
  %v1013 = vsel %vm1012, %v1009, %v895
  %v1014 = vsel %vm1012, %v1009, 0.0
  %s1015 = scalar_lea.vmem %s4, 56
  %1016 = vst [vmem:[%s1015] sm:$0xff] %v1014
  %1017 = vst [vmem:[#allocation2] sm:$0xff] %v1013
  // Predicated region
  $region22: #{encoder_forward.3} parent=0 // pred_check
    %p1018 = pneg %p19
  $region23: #{encoder_forward.3} parent=0 // pred_check_branch
    %1020 = sbr.rel (%p1018) target = $region25
  $region24: #{encoder_forward.3} parent=0 // pred_region
    %1021 = vst [vmem:[%s5] sm:$0xff] %v1013
  $region25: #{encoder_forward.3} parent=0 // pred_fallthru
    _
  // Predicated region
  $region26: #{encoder_forward.3} parent=0 // pred_check
    _
  $region27: #{encoder_forward.3} parent=0 // pred_check_branch
    %1023 = sbr.rel (0) target = $region29
  $region28: #{encoder_forward.3} parent=0 // pred_region
    _
  $region29: #{encoder_forward.3} parent=0 // pred_fallthru
    _
  // Predicated region
  $region30: #{encoder_forward.3} parent=0 // pred_check
    _
  $region31: #{encoder_forward.3} parent=0 // pred_check_branch
    %1025 = sbr.rel (0) target = $region33
  $region32: #{encoder_forward.3} parent=0 // pred_region
    _
  $region33: #{encoder_forward.3} parent=0 // pred_fallthru
    _
  // Predicated region
  $region34: #{encoder_forward.3} parent=0 // pred_check
    _
  $region35: #{encoder_forward.3} parent=0 // pred_check_branch
    %1027 = sbr.rel (0) target = $region37
  $region36: #{encoder_forward.3} parent=0 // pred_region
    _
  $region37: #{encoder_forward.3} parent=0 // pred_fallthru
    _
  // Predicated region
  $region38: #{encoder_forward.3} parent=0 // pred_check
    _
  $region39: #{encoder_forward.3} parent=0 // pred_check_branch
    %1029 = sbr.rel (0) target = $region41
  $region40: #{encoder_forward.3} parent=0 // pred_region
    _
  $region41: #{encoder_forward.3} parent=0 // pred_fallthru
    _

</llo_original>
